<compile_context>
chip_gen: v5e
topology: v5e:2x2
jax: 0.10.0
libtpu: 0.0.40
codegen_flags: <defaults>
</compile_context>

<pallas_src>
import math
from functools import partial

import jax
import jax.numpy as jnp
from jax.experimental import pallas as pl
from jax.experimental.pallas import tpu as pltpu


def _mha_kernel(*refs, num_heads, head_dim, has_qpos, has_kpos, compute_dtype):
    """Whole-problem MHA forward (single invocation, everything VMEM-resident).

    Sequence refs keep the module's native (L, N, E) layout; per-batch (L, E)
    slabs are pulled with strided ref loads so no wrapper transpose / extra
    HBM pass is needed.  Projection weights arrive pre-split per head.
    """
    it = iter(refs)
    q_ref, k_ref, v_ref, id_ref = next(it), next(it), next(it), next(it)
    qpos_ref = next(it) if has_qpos else None
    kpos_ref = next(it) if has_kpos else None
    wq_ref, wk_ref, wv_ref = next(it), next(it), next(it)     # (H, E, hd) cdt
    bq_ref, bk_ref, bv_ref = next(it), next(it), next(it)     # (H, 1, hd) f32
    wo_ref, bo_ref = next(it), next(it)                       # (E, E) cdt, (1, E) f32
    o_ref = next(it)                                          # (L, N, E)

    L, N, E = q_ref.shape
    H, hd = num_heads, head_dim
    f32 = jnp.float32
    cdt = compute_dtype
    approx_recip = cdt != jnp.float32

    # Weights are loaded once and reused across the (unrolled) batch loop.
    wq, wk, wv = wq_ref[...], wk_ref[...], wv_ref[...]
    bq, bk, bv = bq_ref[...], bk_ref[...], bv_ref[...]
    wo, bo = wo_ref[...], bo_ref[...]

    # TODO(synk): the batch loop is unrolled at trace time (fine for small N);
    # large N/L belongs to the gridded flash path, not this kernel.
    for n in range(N):
        # ---- inputs: strided (L, E) slab per batch, pos-add on the VPU ------
        xq = q_ref[:, n, :]
        xk = k_ref[:, n, :]
        xv = v_ref[:, n, :]
        if has_qpos:
            xq = xq + qpos_ref[:, n, :]
        if has_kpos:
            xk = xk + kpos_ref[:, n, :]
        xq, xk, xv = xq.astype(cdt), xk.astype(cdt), xv.astype(cdt)

        # ---- in_proj: MXU emits the head-batched (H, L, hd) layout directly -
        # (same total FLOPs as one (L,E)x(E,E) pass; 1/sqrt(hd) pre-folded
        # into wq / bq, f32 accumulation)
        qh = jnp.einsum("hle,hed->hld", jnp.broadcast_to(xq[None], (H, L, E)),
                        wq, preferred_element_type=f32) + bq
        kh = jnp.einsum("hle,hed->hld", jnp.broadcast_to(xk[None], (H, L, E)),
                        wk, preferred_element_type=f32) + bk
        vh = jnp.einsum("hle,hed->hld", jnp.broadcast_to(xv[None], (H, L, E)),
                        wv, preferred_element_type=f32) + bv

        # ---- head-batched attention, softmax kept in f32 --------------------
        s = jnp.einsum("hqd,hkd->hqk", qh.astype(cdt), kh.astype(cdt),
                       preferred_element_type=f32)                  # (H, L, L)
        s_max = jnp.max(s, axis=-1, keepdims=True)
        p = jnp.exp(s - s_max)
        denom = jnp.sum(p, axis=-1, keepdims=True)
        # EUP reciprocal: approximate on the bf16 fast path, exact on f32.
        p = p * pl.reciprocal(denom, approx=approx_recip)
        o = jnp.einsum("hqk,hkd->hqd", p.astype(cdt), vh.astype(cdt),
                       preferred_element_type=f32)                  # (H, L, hd)

        # ---- out_proj: heads packed back to (L, E) once, single K=E matmul --
        o_cat = jnp.concatenate([o[h].astype(cdt) for h in range(H)], axis=-1)
        out = jnp.dot(o_cat, wo, preferred_element_type=f32) + bo   # (L, E) f32
        out = out + id_ref[:, n, :].astype(f32)                     # residual
        o_ref[:, n, :] = out.astype(o_ref.dtype)


def multihead_attention_pallas(query, key=None, value=None, identity=None,
                               query_pos=None, key_pos=None, *,
                               params, num_heads, compute_dtype=jnp.bfloat16):
    """Forward of the mmcv-style MultiheadAttention wrapper (batch_first=False).

    Sequence tensors use the module's (L, N, E) layout.  `compute_dtype`
    selects the MXU operand precision (accumulation is always float32); pass
    jnp.float32 for reference-precision numerics.
    """
    if key is None:
        key = query
    if value is None:
        value = key
    if identity is None:
        identity = query
    if key_pos is None and query_pos is not None and query_pos.shape == key.shape:
        key_pos = query_pos

    L, N, E = query.shape
    H = num_heads
    assert E % H == 0, "embed_dims must be divisible by num_heads"
    hd = E // H
    cdt = compute_dtype
    out_dtype = identity.dtype
    scale = 1.0 / math.sqrt(hd)

    # ---- weight prep (tiny; constant-folded under jit) ----------------------
    #  * per-head in_proj weights (H, E, hd) so the MXU emits the head-batched
    #    layout directly (no in-kernel head split),
    #  * 1/sqrt(hd) folded into wq / bq,
    #  * MXU operands pre-cast to the compute dtype, biases kept in f32.
    def per_head(w):                      # (E, E) -> (H, E, hd)
        return jnp.transpose(w.reshape(E, H, hd), (1, 0, 2))

    wq = per_head(params["wq"] * scale).astype(cdt)
    wk = per_head(params["wk"]).astype(cdt)
    wv = per_head(params["wv"]).astype(cdt)
    bq = (params["bq"] * scale).reshape(H, 1, hd).astype(jnp.float32)
    bk = params["bk"].reshape(H, 1, hd).astype(jnp.float32)
    bv = params["bv"].reshape(H, 1, hd).astype(jnp.float32)
    wo = params["wo"].astype(cdt)                       # (E, E): full-E contraction
    bo = params["bo"].astype(jnp.float32)               # (1, E)

    # ---- everything-resident VMEM guard -------------------------------------
    n_seq = 4 + (query_pos is not None) + (key_pos is not None)
    est_bytes = 4 * (n_seq * L * N * E              # sequence inputs (f32)
                     + 4 * E * E                    # projection weights
                     + H * L * (2 * L + 6 * hd)     # scores/probs + head-batched q/k/v/o
                     + 2 * L * N * E)               # output + headroom
    if est_bytes > 24 * 1024 * 1024:
        # TODO(synk): gridded flash (online-softmax) path for production shapes.
        raise NotImplementedError(
            f"resident MHA kernel would need ~{est_bytes / 2**20:.1f} MiB of VMEM; "
            "large L/N require the tiled flash path.")

    inputs = [query, key, value, identity]
    if query_pos is not None:
        inputs.append(query_pos)
    if key_pos is not None:
        inputs.append(key_pos)
    inputs += [wq, wk, wv, bq, bk, bv, wo, bo]

    vmem = pl.BlockSpec(memory_space=pltpu.MemorySpace.VMEM)
    return pl.pallas_call(
        partial(_mha_kernel, num_heads=H, head_dim=hd,
                has_qpos=query_pos is not None,
                has_kpos=key_pos is not None,
                compute_dtype=cdt),
        out_shape=jax.ShapeDtypeStruct((L, N, E), out_dtype),
        in_specs=[vmem] * len(inputs),
        out_specs=vmem,
    )(*inputs)


def _reference(query, key, value, identity, query_pos, params, num_heads):
    """Pure-JAX reference mirroring nn.MultiheadAttention (eval mode)."""
    hp = jax.lax.Precision.HIGHEST
    key_pos = query_pos if (query_pos is not None and
                            query_pos.shape == key.shape) else None
    if query_pos is not None:
        query = query + query_pos
    if key_pos is not None:
        key = key + key_pos
    L, N, E = query.shape
    hd = E // num_heads
    q = jnp.einsum("lne,ef->lnf", query, params["wq"], precision=hp) + params["bq"][0]
    k = jnp.einsum("lne,ef->lnf", key, params["wk"], precision=hp) + params["bk"][0]
    v = jnp.einsum("lne,ef->lnf", value, params["wv"], precision=hp) + params["bv"][0]
    q = q.reshape(L, N, num_heads, hd) / math.sqrt(hd)
    k = k.reshape(L, N, num_heads, hd)
    v = v.reshape(L, N, num_heads, hd)
    s = jnp.einsum("qnhd,knhd->nhqk", q, k, precision=hp)
    p = jax.nn.softmax(s, axis=-1)
    o = jnp.einsum("nhqk,knhd->qnhd", p, v, precision=hp).reshape(L, N, E)
    o = jnp.einsum("lne,ef->lnf", o, params["wo"], precision=hp) + params["bo"][0]
    return identity + o


def init_params(key, embed_dims):
    """Deterministic synthetic init (xavier-ish weights, small random biases)."""
    ks = jax.random.split(key, 8)
    lim = math.sqrt(6.0 / (2 * embed_dims))
    u = lambda k: jax.random.uniform(k, (embed_dims, embed_dims),
                                     jnp.float32, -lim, lim)
    b = lambda k: jax.random.uniform(k, (1, embed_dims), jnp.float32, -0.1, 0.1)
    return dict(wq=u(ks[0]), wk=u(ks[1]), wv=u(ks[2]), wo=u(ks[3]),
                bq=b(ks[4]), bk=b(ks[5]), bv=b(ks[6]), bo=b(ks[7]))


if __name__ == "__main__":
    L, N, E, H = 8, 2, 32, 4          # seq, batch, embed_dims, num_heads

    root = jax.random.PRNGKey(0)
    kq, kp, kw = jax.random.split(root, 3)
    query = jax.random.normal(kq, (L, N, E), jnp.float32)       # (L, N, E)
    query_pos = jax.random.normal(kp, (L, N, E), jnp.float32)
    params = init_params(kw, E)

    ref = _reference(query, query, query, query, query_pos, params, H)

    # Reference-precision path (f32 MXU operands, exact reciprocal).
    # Threshold is far below any structural-bug error (wrong head grouping /
    # scaling gives O(0.3+) deviations) while staying robust to the MXU's
    # f32 pass decomposition.
    run_f32 = jax.jit(partial(multihead_attention_pallas, params=params,
                              num_heads=H, compute_dtype=jnp.float32))
    out_f32 = jax.block_until_ready(run_f32(query, query_pos=query_pos))
    assert out_f32.shape == (L, N, E)
    err_f32 = float(jnp.max(jnp.abs(out_f32 - ref)))
    assert err_f32 < 5e-2, f"f32 path mismatch: max abs err = {err_f32}"

    # Default fast path (bf16 MXU operands, f32 accumulation, approx recip).
    run_bf16 = jax.jit(partial(multihead_attention_pallas, params=params,
                               num_heads=H))
    out_bf16 = jax.block_until_ready(run_bf16(query, query_pos=query_pos))
    assert out_bf16.shape == (L, N, E)
    err_bf16 = float(jnp.max(jnp.abs(out_bf16 - ref)))
    assert err_bf16 < 0.15, f"bf16 path sanity check failed: max abs err = {err_bf16}"

    print("KERNEL_OK")
</pallas_src>

<mosaic_0001>
module attributes {stable_mosaic.version = 11 : i64} {
  func.func @_mha_kernel(%arg0: memref<8x2x32xf32, #tpu.memory_space<vmem>>, %arg1: memref<8x2x32xf32, #tpu.memory_space<vmem>>, %arg2: memref<8x2x32xf32, #tpu.memory_space<vmem>>, %arg3: memref<8x2x32xf32, #tpu.memory_space<vmem>>, %arg4: memref<8x2x32xf32, #tpu.memory_space<vmem>>, %arg5: memref<8x2x32xf32, #tpu.memory_space<vmem>>, %arg6: memref<4x32x8xf32, #tpu.memory_space<vmem>>, %arg7: memref<4x32x8xf32, #tpu.memory_space<vmem>>, %arg8: memref<4x32x8xf32, #tpu.memory_space<vmem>>, %arg9: memref<4x1x8xf32, #tpu.memory_space<vmem>>, %arg10: memref<4x1x8xf32, #tpu.memory_space<vmem>>, %arg11: memref<4x1x8xf32, #tpu.memory_space<vmem>>, %arg12: memref<32x32xf32, #tpu.memory_space<vmem>>, %arg13: memref<1x32xf32, #tpu.memory_space<vmem>>, %arg14: memref<8x2x32xf32, #tpu.memory_space<vmem>>) attributes {dimension_semantics = [], scalar_prefetch = 0 : i64, scratch_operands = 0 : i64, tpu.core_type = #tpu.core_type<tc>} {
    %c0 = arith.constant 0 : index
    %c0_0 = arith.constant 0 : index
    %c0_1 = arith.constant 0 : index
    %0 = vector.load %arg6[%c0, %c0_0, %c0_1] : memref<4x32x8xf32, #tpu.memory_space<vmem>>, vector<4x32x8xf32>
    %c0_2 = arith.constant 0 : index
    %c0_3 = arith.constant 0 : index
    %c0_4 = arith.constant 0 : index
    %1 = vector.load %arg7[%c0_2, %c0_3, %c0_4] : memref<4x32x8xf32, #tpu.memory_space<vmem>>, vector<4x32x8xf32>
    %c0_5 = arith.constant 0 : index
    %c0_6 = arith.constant 0 : index
    %c0_7 = arith.constant 0 : index
    %2 = vector.load %arg8[%c0_5, %c0_6, %c0_7] : memref<4x32x8xf32, #tpu.memory_space<vmem>>, vector<4x32x8xf32>
    %c0_8 = arith.constant 0 : index
    %c0_9 = arith.constant 0 : index
    %c0_10 = arith.constant 0 : index
    %3 = vector.load %arg9[%c0_8, %c0_9, %c0_10] : memref<4x1x8xf32, #tpu.memory_space<vmem>>, vector<4x1x8xf32>
    %c0_11 = arith.constant 0 : index
    %c0_12 = arith.constant 0 : index
    %c0_13 = arith.constant 0 : index
    %4 = vector.load %arg10[%c0_11, %c0_12, %c0_13] : memref<4x1x8xf32, #tpu.memory_space<vmem>>, vector<4x1x8xf32>
    %c0_14 = arith.constant 0 : index
    %c0_15 = arith.constant 0 : index
    %c0_16 = arith.constant 0 : index
    %5 = vector.load %arg11[%c0_14, %c0_15, %c0_16] : memref<4x1x8xf32, #tpu.memory_space<vmem>>, vector<4x1x8xf32>
    %c0_17 = arith.constant 0 : index
    %c0_18 = arith.constant 0 : index
    %6 = vector.load %arg12[%c0_17, %c0_18] : memref<32x32xf32, #tpu.memory_space<vmem>>, vector<32x32xf32>
    %c0_19 = arith.constant 0 : index
    %c0_20 = arith.constant 0 : index
    %7 = vector.load %arg13[%c0_19, %c0_20] : memref<1x32xf32, #tpu.memory_space<vmem>>, vector<1x32xf32>
    %c0_21 = arith.constant 0 : index
    %c0_22 = arith.constant 0 : index
    %c0_23 = arith.constant 0 : index
    %8 = vector.load %arg0[%c0_21, %c0_22, %c0_23] : memref<8x2x32xf32, #tpu.memory_space<vmem>>, vector<8x1x32xf32>
    %9 = vector.shape_cast %8 : vector<8x1x32xf32> to vector<8x32xf32>
    %c0_24 = arith.constant 0 : index
    %c0_25 = arith.constant 0 : index
    %c0_26 = arith.constant 0 : index
    %10 = vector.load %arg1[%c0_24, %c0_25, %c0_26] : memref<8x2x32xf32, #tpu.memory_space<vmem>>, vector<8x1x32xf32>
    %11 = vector.shape_cast %10 : vector<8x1x32xf32> to vector<8x32xf32>
    %c0_27 = arith.constant 0 : index
    %c0_28 = arith.constant 0 : index
    %c0_29 = arith.constant 0 : index
    %12 = vector.load %arg2[%c0_27, %c0_28, %c0_29] : memref<8x2x32xf32, #tpu.memory_space<vmem>>, vector<8x1x32xf32>
    %13 = vector.shape_cast %12 : vector<8x1x32xf32> to vector<8x32xf32>
    %c0_30 = arith.constant 0 : index
    %c0_31 = arith.constant 0 : index
    %c0_32 = arith.constant 0 : index
    %14 = vector.load %arg4[%c0_30, %c0_31, %c0_32] : memref<8x2x32xf32, #tpu.memory_space<vmem>>, vector<8x1x32xf32>
    %15 = vector.shape_cast %14 : vector<8x1x32xf32> to vector<8x32xf32>
    %16 = arith.addf %9, %15 : vector<8x32xf32>
    %c0_33 = arith.constant 0 : index
    %c0_34 = arith.constant 0 : index
    %c0_35 = arith.constant 0 : index
    %17 = vector.load %arg5[%c0_33, %c0_34, %c0_35] : memref<8x2x32xf32, #tpu.memory_space<vmem>>, vector<8x1x32xf32>
    %18 = vector.shape_cast %17 : vector<8x1x32xf32> to vector<8x32xf32>
    %19 = arith.addf %11, %18 : vector<8x32xf32>
    %20 = vector.shape_cast %16 : vector<8x32xf32> to vector<1x8x32xf32>
    %21 = vector.shape_cast %20 : vector<1x8x32xf32> to vector<1x8x32xf32>
    %22 = vector.broadcast %21 : vector<1x8x32xf32> to vector<4x8x32xf32>
    "tpu.trace_start"() <{level = 10 : i32, message = "hle,hed->hld"}> : () -> ()
    %cst = arith.constant dense<0.000000e+00> : vector<4x8x8xf32>
    %23 = tpu.matmul %22, %0, %cst {dimension_numbers = #tpu.dot_dimension_numbers<[2], [1], [1], [2], [0, 0, 0, 1, 1, 2], [0], [0]>} : vector<4x8x32xf32>, vector<4x32x8xf32>, vector<4x8x8xf32> -> vector<4x8x8xf32>
    "tpu.trace_stop"() : () -> ()
    %24 = vector.broadcast %3 : vector<4x1x8xf32> to vector<4x8x8xf32>
    %25 = arith.addf %23, %24 : vector<4x8x8xf32>
    %26 = vector.shape_cast %19 : vector<8x32xf32> to vector<1x8x32xf32>
    %27 = vector.shape_cast %26 : vector<1x8x32xf32> to vector<1x8x32xf32>
    %28 = vector.broadcast %27 : vector<1x8x32xf32> to vector<4x8x32xf32>
    "tpu.trace_start"() <{level = 10 : i32, message = "hle,hed->hld"}> : () -> ()
    %cst_36 = arith.constant dense<0.000000e+00> : vector<4x8x8xf32>
    %29 = tpu.matmul %28, %1, %cst_36 {dimension_numbers = #tpu.dot_dimension_numbers<[2], [1], [1], [2], [0, 0, 0, 1, 1, 2], [0], [0]>} : vector<4x8x32xf32>, vector<4x32x8xf32>, vector<4x8x8xf32> -> vector<4x8x8xf32>
    "tpu.trace_stop"() : () -> ()
    %30 = vector.broadcast %4 : vector<4x1x8xf32> to vector<4x8x8xf32>
    %31 = arith.addf %29, %30 : vector<4x8x8xf32>
    %32 = vector.shape_cast %13 : vector<8x32xf32> to vector<1x8x32xf32>
    %33 = vector.shape_cast %32 : vector<1x8x32xf32> to vector<1x8x32xf32>
    %34 = vector.broadcast %33 : vector<1x8x32xf32> to vector<4x8x32xf32>
    "tpu.trace_start"() <{level = 10 : i32, message = "hle,hed->hld"}> : () -> ()
    %cst_37 = arith.constant dense<0.000000e+00> : vector<4x8x8xf32>
    %35 = tpu.matmul %34, %2, %cst_37 {dimension_numbers = #tpu.dot_dimension_numbers<[2], [1], [1], [2], [0, 0, 0, 1, 1, 2], [0], [0]>} : vector<4x8x32xf32>, vector<4x32x8xf32>, vector<4x8x8xf32> -> vector<4x8x8xf32>
    "tpu.trace_stop"() : () -> ()
    %36 = vector.broadcast %5 : vector<4x1x8xf32> to vector<4x8x8xf32>
    %37 = arith.addf %35, %36 : vector<4x8x8xf32>
    "tpu.trace_start"() <{level = 10 : i32, message = "hqd,hkd->hqk"}> : () -> ()
    %cst_38 = arith.constant dense<0.000000e+00> : vector<4x8x8xf32>
    %38 = tpu.matmul %25, %31, %cst_38 {dimension_numbers = #tpu.dot_dimension_numbers<[2], [2], [1], [1], [0, 0, 0, 1, 1, 1], [0], [0]>} : vector<4x8x8xf32>, vector<4x8x8xf32>, vector<4x8x8xf32> -> vector<4x8x8xf32>
    "tpu.trace_stop"() : () -> ()
    %cst_39 = arith.constant dense<0xFF800000> : vector<4x8xf32>
    %39 = vector.multi_reduction <maximumf>, %38, %cst_39 [2] : vector<4x8x8xf32> to vector<4x8xf32>
    %40 = vector.shape_cast %39 : vector<4x8xf32> to vector<4x8x1xf32>
    %41 = vector.broadcast %40 : vector<4x8x1xf32> to vector<4x8x8xf32>
    %42 = arith.subf %38, %41 : vector<4x8x8xf32>
    %43 = math.exp %42 : vector<4x8x8xf32>
    %cst_40 = arith.constant dense<0.000000e+00> : vector<4x8xf32>
    %44 = vector.multi_reduction <add>, %43, %cst_40 [2] : vector<4x8x8xf32> to vector<4x8xf32>
    %45 = vector.shape_cast %44 : vector<4x8xf32> to vector<4x8x1xf32>
    %46 = tpu.reciprocal %45 : vector<4x8x1xf32> -> vector<4x8x1xf32>
    %47 = vector.broadcast %46 : vector<4x8x1xf32> to vector<4x8x8xf32>
    %48 = arith.mulf %43, %47 : vector<4x8x8xf32>
    "tpu.trace_start"() <{level = 10 : i32, message = "hqk,hkd->hqd"}> : () -> ()
    %cst_41 = arith.constant dense<0.000000e+00> : vector<4x8x8xf32>
    %49 = tpu.matmul %48, %37, %cst_41 {dimension_numbers = #tpu.dot_dimension_numbers<[2], [1], [1], [2], [0, 0, 0, 1, 1, 2], [0], [0]>} : vector<4x8x8xf32>, vector<4x8x8xf32>, vector<4x8x8xf32> -> vector<4x8x8xf32>
    "tpu.trace_stop"() : () -> ()
    %50 = vector.extract_strided_slice %49 {offsets = [0, 0, 0], sizes = [1, 8, 8], strides = [1, 1, 1]} : vector<4x8x8xf32> to vector<1x8x8xf32>
    %51 = vector.shape_cast %50 : vector<1x8x8xf32> to vector<8x8xf32>
    %52 = vector.extract_strided_slice %49 {offsets = [1, 0, 0], sizes = [1, 8, 8], strides = [1, 1, 1]} : vector<4x8x8xf32> to vector<1x8x8xf32>
    %53 = vector.shape_cast %52 : vector<1x8x8xf32> to vector<8x8xf32>
    %54 = vector.extract_strided_slice %49 {offsets = [2, 0, 0], sizes = [1, 8, 8], strides = [1, 1, 1]} : vector<4x8x8xf32> to vector<1x8x8xf32>
    %55 = vector.shape_cast %54 : vector<1x8x8xf32> to vector<8x8xf32>
    %56 = vector.extract_strided_slice %49 {offsets = [3, 0, 0], sizes = [1, 8, 8], strides = [1, 1, 1]} : vector<4x8x8xf32> to vector<1x8x8xf32>
    %57 = vector.shape_cast %56 : vector<1x8x8xf32> to vector<8x8xf32>
    %58 = tpu.concatenate %51, %53, %55, %57 in 1 : vector<8x8xf32>, vector<8x8xf32>, vector<8x8xf32>, vector<8x8xf32> -> vector<8x32xf32>
    %cst_42 = arith.constant dense<0.000000e+00> : vector<8x32xf32>
    %59 = tpu.matmul %58, %6, %cst_42 {dimension_numbers = #tpu.dot_dimension_numbers<[1], [0], [0], [1], [0, 0, 1, 1], [], []>} : vector<8x32xf32>, vector<32x32xf32>, vector<8x32xf32> -> vector<8x32xf32>
    %60 = vector.broadcast %7 : vector<1x32xf32> to vector<8x32xf32>
    %61 = arith.addf %59, %60 : vector<8x32xf32>
    %c0_43 = arith.constant 0 : index
    %c0_44 = arith.constant 0 : index
    %c0_45 = arith.constant 0 : index
    %62 = vector.load %arg3[%c0_43, %c0_44, %c0_45] : memref<8x2x32xf32, #tpu.memory_space<vmem>>, vector<8x1x32xf32>
    %63 = vector.shape_cast %62 : vector<8x1x32xf32> to vector<8x32xf32>
    %64 = arith.addf %61, %63 : vector<8x32xf32>
    %c0_46 = arith.constant 0 : index
    %c0_47 = arith.constant 0 : index
    %c0_48 = arith.constant 0 : index
    %65 = vector.load %arg14[%c0_46, %c0_47, %c0_48] : memref<8x2x32xf32, #tpu.memory_space<vmem>>, vector<8x1x32xf32>
    %66 = vector.shape_cast %65 : vector<8x1x32xf32> to vector<8x32xf32>
    %67 = vector.shape_cast %64 : vector<8x32xf32> to vector<8x1x32xf32>
    tpu.vector_store %arg14[%c0_46, %c0_47, %c0_48], %67 {strides = array<i32>} : memref<8x2x32xf32, #tpu.memory_space<vmem>>, vector<8x1x32xf32>,
    %c0_49 = arith.constant 0 : index
    %c1 = arith.constant 1 : index
    %c0_50 = arith.constant 0 : index
    %68 = vector.load %arg0[%c0_49, %c1, %c0_50] : memref<8x2x32xf32, #tpu.memory_space<vmem>>, vector<8x1x32xf32>
    %69 = vector.shape_cast %68 : vector<8x1x32xf32> to vector<8x32xf32>
    %c0_51 = arith.constant 0 : index
    %c1_52 = arith.constant 1 : index
    %c0_53 = arith.constant 0 : index
    %70 = vector.load %arg1[%c0_51, %c1_52, %c0_53] : memref<8x2x32xf32, #tpu.memory_space<vmem>>, vector<8x1x32xf32>
    %71 = vector.shape_cast %70 : vector<8x1x32xf32> to vector<8x32xf32>
    %c0_54 = arith.constant 0 : index
    %c1_55 = arith.constant 1 : index
    %c0_56 = arith.constant 0 : index
    %72 = vector.load %arg2[%c0_54, %c1_55, %c0_56] : memref<8x2x32xf32, #tpu.memory_space<vmem>>, vector<8x1x32xf32>
    %73 = vector.shape_cast %72 : vector<8x1x32xf32> to vector<8x32xf32>
    %c0_57 = arith.constant 0 : index
    %c1_58 = arith.constant 1 : index
    %c0_59 = arith.constant 0 : index
    %74 = vector.load %arg4[%c0_57, %c1_58, %c0_59] : memref<8x2x32xf32, #tpu.memory_space<vmem>>, vector<8x1x32xf32>
    %75 = vector.shape_cast %74 : vector<8x1x32xf32> to vector<8x32xf32>
    %76 = arith.addf %69, %75 : vector<8x32xf32>
    %c0_60 = arith.constant 0 : index
    %c1_61 = arith.constant 1 : index
    %c0_62 = arith.constant 0 : index
    %77 = vector.load %arg5[%c0_60, %c1_61, %c0_62] : memref<8x2x32xf32, #tpu.memory_space<vmem>>, vector<8x1x32xf32>
    %78 = vector.shape_cast %77 : vector<8x1x32xf32> to vector<8x32xf32>
    %79 = arith.addf %71, %78 : vector<8x32xf32>
    %80 = vector.shape_cast %76 : vector<8x32xf32> to vector<1x8x32xf32>
    %81 = vector.shape_cast %80 : vector<1x8x32xf32> to vector<1x8x32xf32>
    %82 = vector.broadcast %81 : vector<1x8x32xf32> to vector<4x8x32xf32>
    "tpu.trace_start"() <{level = 10 : i32, message = "hle,hed->hld"}> : () -> ()
    %cst_63 = arith.constant dense<0.000000e+00> : vector<4x8x8xf32>
    %83 = tpu.matmul %82, %0, %cst_63 {dimension_numbers = #tpu.dot_dimension_numbers<[2], [1], [1], [2], [0, 0, 0, 1, 1, 2], [0], [0]>} : vector<4x8x32xf32>, vector<4x32x8xf32>, vector<4x8x8xf32> -> vector<4x8x8xf32>
    "tpu.trace_stop"() : () -> ()
    %84 = vector.broadcast %3 : vector<4x1x8xf32> to vector<4x8x8xf32>
    %85 = arith.addf %83, %84 : vector<4x8x8xf32>
    %86 = vector.shape_cast %79 : vector<8x32xf32> to vector<1x8x32xf32>
    %87 = vector.shape_cast %86 : vector<1x8x32xf32> to vector<1x8x32xf32>
    %88 = vector.broadcast %87 : vector<1x8x32xf32> to vector<4x8x32xf32>
    "tpu.trace_start"() <{level = 10 : i32, message = "hle,hed->hld"}> : () -> ()
    %cst_64 = arith.constant dense<0.000000e+00> : vector<4x8x8xf32>
    %89 = tpu.matmul %88, %1, %cst_64 {dimension_numbers = #tpu.dot_dimension_numbers<[2], [1], [1], [2], [0, 0, 0, 1, 1, 2], [0], [0]>} : vector<4x8x32xf32>, vector<4x32x8xf32>, vector<4x8x8xf32> -> vector<4x8x8xf32>
    "tpu.trace_stop"() : () -> ()
    %90 = vector.broadcast %4 : vector<4x1x8xf32> to vector<4x8x8xf32>
    %91 = arith.addf %89, %90 : vector<4x8x8xf32>
    %92 = vector.shape_cast %73 : vector<8x32xf32> to vector<1x8x32xf32>
    %93 = vector.shape_cast %92 : vector<1x8x32xf32> to vector<1x8x32xf32>
    %94 = vector.broadcast %93 : vector<1x8x32xf32> to vector<4x8x32xf32>
    "tpu.trace_start"() <{level = 10 : i32, message = "hle,hed->hld"}> : () -> ()
    %cst_65 = arith.constant dense<0.000000e+00> : vector<4x8x8xf32>
    %95 = tpu.matmul %94, %2, %cst_65 {dimension_numbers = #tpu.dot_dimension_numbers<[2], [1], [1], [2], [0, 0, 0, 1, 1, 2], [0], [0]>} : vector<4x8x32xf32>, vector<4x32x8xf32>, vector<4x8x8xf32> -> vector<4x8x8xf32>
    "tpu.trace_stop"() : () -> ()
    %96 = vector.broadcast %5 : vector<4x1x8xf32> to vector<4x8x8xf32>
    %97 = arith.addf %95, %96 : vector<4x8x8xf32>
    "tpu.trace_start"() <{level = 10 : i32, message = "hqd,hkd->hqk"}> : () -> ()
    %cst_66 = arith.constant dense<0.000000e+00> : vector<4x8x8xf32>
    %98 = tpu.matmul %85, %91, %cst_66 {dimension_numbers = #tpu.dot_dimension_numbers<[2], [2], [1], [1], [0, 0, 0, 1, 1, 1], [0], [0]>} : vector<4x8x8xf32>, vector<4x8x8xf32>, vector<4x8x8xf32> -> vector<4x8x8xf32>
    "tpu.trace_stop"() : () -> ()
    %cst_67 = arith.constant dense<0xFF800000> : vector<4x8xf32>
    %99 = vector.multi_reduction <maximumf>, %98, %cst_67 [2] : vector<4x8x8xf32> to vector<4x8xf32>
    %100 = vector.shape_cast %99 : vector<4x8xf32> to vector<4x8x1xf32>
    %101 = vector.broadcast %100 : vector<4x8x1xf32> to vector<4x8x8xf32>
    %102 = arith.subf %98, %101 : vector<4x8x8xf32>
    %103 = math.exp %102 : vector<4x8x8xf32>
    %cst_68 = arith.constant dense<0.000000e+00> : vector<4x8xf32>
    %104 = vector.multi_reduction <add>, %103, %cst_68 [2] : vector<4x8x8xf32> to vector<4x8xf32>
    %105 = vector.shape_cast %104 : vector<4x8xf32> to vector<4x8x1xf32>
    %106 = tpu.reciprocal %105 : vector<4x8x1xf32> -> vector<4x8x1xf32>
    %107 = vector.broadcast %106 : vector<4x8x1xf32> to vector<4x8x8xf32>
    %108 = arith.mulf %103, %107 : vector<4x8x8xf32>
    "tpu.trace_start"() <{level = 10 : i32, message = "hqk,hkd->hqd"}> : () -> ()
    %cst_69 = arith.constant dense<0.000000e+00> : vector<4x8x8xf32>
    %109 = tpu.matmul %108, %97, %cst_69 {dimension_numbers = #tpu.dot_dimension_numbers<[2], [1], [1], [2], [0, 0, 0, 1, 1, 2], [0], [0]>} : vector<4x8x8xf32>, vector<4x8x8xf32>, vector<4x8x8xf32> -> vector<4x8x8xf32>
    "tpu.trace_stop"() : () -> ()
    %110 = vector.extract_strided_slice %109 {offsets = [0, 0, 0], sizes = [1, 8, 8], strides = [1, 1, 1]} : vector<4x8x8xf32> to vector<1x8x8xf32>
    %111 = vector.shape_cast %110 : vector<1x8x8xf32> to vector<8x8xf32>
    %112 = vector.extract_strided_slice %109 {offsets = [1, 0, 0], sizes = [1, 8, 8], strides = [1, 1, 1]} : vector<4x8x8xf32> to vector<1x8x8xf32>
    %113 = vector.shape_cast %112 : vector<1x8x8xf32> to vector<8x8xf32>
    %114 = vector.extract_strided_slice %109 {offsets = [2, 0, 0], sizes = [1, 8, 8], strides = [1, 1, 1]} : vector<4x8x8xf32> to vector<1x8x8xf32>
    %115 = vector.shape_cast %114 : vector<1x8x8xf32> to vector<8x8xf32>
    %116 = vector.extract_strided_slice %109 {offsets = [3, 0, 0], sizes = [1, 8, 8], strides = [1, 1, 1]} : vector<4x8x8xf32> to vector<1x8x8xf32>
    %117 = vector.shape_cast %116 : vector<1x8x8xf32> to vector<8x8xf32>
    %118 = tpu.concatenate %111, %113, %115, %117 in 1 : vector<8x8xf32>, vector<8x8xf32>, vector<8x8xf32>, vector<8x8xf32> -> vector<8x32xf32>
    %cst_70 = arith.constant dense<0.000000e+00> : vector<8x32xf32>
    %119 = tpu.matmul %118, %6, %cst_70 {dimension_numbers = #tpu.dot_dimension_numbers<[1], [0], [0], [1], [0, 0, 1, 1], [], []>} : vector<8x32xf32>, vector<32x32xf32>, vector<8x32xf32> -> vector<8x32xf32>
    %120 = vector.broadcast %7 : vector<1x32xf32> to vector<8x32xf32>
    %121 = arith.addf %119, %120 : vector<8x32xf32>
    %c0_71 = arith.constant 0 : index
    %c1_72 = arith.constant 1 : index
    %c0_73 = arith.constant 0 : index
    %122 = vector.load %arg3[%c0_71, %c1_72, %c0_73] : memref<8x2x32xf32, #tpu.memory_space<vmem>>, vector<8x1x32xf32>
    %123 = vector.shape_cast %122 : vector<8x1x32xf32> to vector<8x32xf32>
    %124 = arith.addf %121, %123 : vector<8x32xf32>
    %c0_74 = arith.constant 0 : index
    %c1_75 = arith.constant 1 : index
    %c0_76 = arith.constant 0 : index
    %125 = vector.load %arg14[%c0_74, %c1_75, %c0_76] : memref<8x2x32xf32, #tpu.memory_space<vmem>>, vector<8x1x32xf32>
    %126 = vector.shape_cast %125 : vector<8x1x32xf32> to vector<8x32xf32>
    %127 = vector.shape_cast %124 : vector<8x32xf32> to vector<8x1x32xf32>
    tpu.vector_store %arg14[%c0_74, %c1_75, %c0_76], %127 {strides = array<i32>} : memref<8x2x32xf32, #tpu.memory_space<vmem>>, vector<8x1x32xf32>,
    return
  }
}

</mosaic_0001>

<llo_original>
// kernel: multihead_attention_pallas.1
$region0: #{multihead_attention_pallas.1}
  #allocation0 [shape = 'u32[]', space=smem, size = 0x4, offset = 0x4, fixed_abs, tag = 'smem constant byte address 0x4 - core index']
  #allocation1 [shape = 'u32[72,128]{1,0:T(1,128)}', space=vmem, size = 0x9000, scoped, tag = 'internal scratch']
  %s0 = inlined_call_operand.hbm [shape: f32[8,2,32], index: 0, kind: input, shape index: {}, may-alias: {0,1,2,3}]
  %s1 = inlined_call_operand.hbm [shape: f32[8,2,32], index: 1, kind: input, shape index: {}, may-alias: {0,1,2,3}]
  %s2 = inlined_call_operand.hbm [shape: f32[8,2,32], index: 2, kind: input, shape index: {}, may-alias: {0,1,2,3}]
  %s3 = inlined_call_operand.hbm [shape: f32[8,2,32], index: 3, kind: input, shape index: {}, may-alias: {0,1,2,3}]
  %s4 = inlined_call_operand.hbm [shape: f32[8,2,32], index: 4, kind: input, shape index: {}, may-alias: {4,5}]
  %s5 = inlined_call_operand.hbm [shape: f32[8,2,32], index: 5, kind: input, shape index: {}, may-alias: {4,5}]
  %s6 = inlined_call_operand.hbm [shape: f32[4,32,8], index: 6, kind: input, shape index: {}]
  %s7 = inlined_call_operand.hbm [shape: f32[4,32,8], index: 7, kind: input, shape index: {}]
  %s8 = inlined_call_operand.hbm [shape: f32[4,32,8], index: 8, kind: input, shape index: {}]
  %s9 = inlined_call_operand.hbm [shape: f32[4,1,8], index: 9, kind: input, shape index: {}]
  %s10 = inlined_call_operand.hbm [shape: f32[4,1,8], index: 10, kind: input, shape index: {}]
  %s11 = inlined_call_operand.vmem [shape: f32[4,1,8], index: 11, kind: input, shape index: {}]
  %s12 = inlined_call_operand.hbm [shape: f32[32,32], index: 12, kind: input, shape index: {}]
  %s13 = inlined_call_operand.vmem [shape: f32[1,32], index: 13, kind: input, shape index: {}]
  %s14 = inlined_call_operand.hbm [shape: f32[8,2,32], index: 14, kind: output, shape index: {}]
  %s15 = sld [smem:[#allocation0]]
  $region114: #{multihead_attention_pallas.1} parent=0
    _
  %s17 = ssub.s32 1, %s15
  %s18 = scalar_select 0, %s17, %s15
  $region1: #{multihead_attention_pallas.1} parent=0
    #allocation2 [shape = 'u8[8192]{0}', space=vmem, size = 0x2000, scoped, tag = 'input window, operand 0, single buffered']
    #allocation3 [shape = 's32[1]{0}', space=sflag, size = 0x4, scoped, tag = 'scoped memory for multihead_attention_pallas.1']
    #allocation4 [shape = 's32[1]{0}', space=sflag, size = 0x4, scoped, tag = 'scoped memory for multihead_attention_pallas.1']
    #allocation5 [shape = 'u8[8192]{0}', space=vmem, size = 0x2000, scoped, tag = 'input window, operand 1, single buffered']
    #allocation6 [shape = 's32[1]{0}', space=sflag, size = 0x4, scoped, tag = 'scoped memory for multihead_attention_pallas.1']
    #allocation7 [shape = 'u8[8192]{0}', space=vmem, size = 0x2000, scoped, tag = 'input window, operand 2, single buffered']
    #allocation8 [shape = 'u8[8192]{0}', space=vmem, size = 0x2000, scoped, tag = 'input window, operand 3, single buffered']
    #allocation9 [shape = 's32[1]{0}', space=sflag, size = 0x4, scoped, tag = 'scoped memory for multihead_attention_pallas.1']
    #allocation10 [shape = 'u8[8192]{0}', space=vmem, size = 0x2000, scoped, tag = 'input window, operand 4, single buffered']
    #allocation11 [shape = 'u8[8192]{0}', space=vmem, size = 0x2000, scoped, tag = 'input window, operand 5, single buffered']
    #allocation12 [shape = 's32[1]{0}', space=sflag, size = 0x4, scoped, tag = 'scoped memory for multihead_attention_pallas.1']
    #allocation13 [shape = 'u8[65536]{0}', space=vmem, size = 0x10000, scoped, tag = 'input window, operand 6, single buffered']
    #allocation14 [shape = 'u8[65536]{0}', space=vmem, size = 0x10000, scoped, tag = 'input window, operand 7, single buffered']
    #allocation15 [shape = 's32[1]{0}', space=sflag, size = 0x4, scoped, tag = 'scoped memory for multihead_attention_pallas.1']
    #allocation16 [shape = 'u8[65536]{0}', space=vmem, size = 0x10000, scoped, tag = 'input window, operand 8, single buffered']
    #allocation17 [shape = 'u8[2048]{0}', space=vmem, size = 0x800, scoped, tag = 'input window, operand 9, single buffered']
    #allocation18 [shape = 's32[1]{0}', space=sflag, size = 0x4, scoped, tag = 'scoped memory for multihead_attention_pallas.1']
    #allocation19 [shape = 'u8[2048]{0}', space=vmem, size = 0x800, scoped, tag = 'input window, operand 10, single buffered']
    #allocation20 [shape = 'u8[16384]{0}', space=vmem, size = 0x4000, scoped, tag = 'input window, operand 12, single buffered']
    #allocation21 [shape = 's32[1]{0}', space=sflag, size = 0x4, scoped, tag = 'scoped memory for multihead_attention_pallas.1']
    #allocation22 [shape = 'u8[8192]{0}', space=vmem, size = 0x2000, scoped, tag = 'output window, operand 0, single buffered']
    %19 = vsyncpa [#allocation3], 0
    %20 = vsyncpa [#allocation6], 0
    %21 = vsyncpa [#allocation9], 0
    %22 = vsyncpa [#allocation12], 0
    %23 = vsyncpa [#allocation15], 0
    %24 = vsyncpa [#allocation18], 0
    %25 = vsyncpa [#allocation21], 0
    %26 = vsyncpa [#allocation4], 0
    // Predicated region
    $region2: #{multihead_attention_pallas.1} parent=1 // pred_check
      _
    $region3: #{multihead_attention_pallas.1} parent=1 // pred_check_branch
      %28 = sbr.rel (0) target = $region5
    $region4: #{multihead_attention_pallas.1} parent=1 // pred_region
      %30 = vsyncadd [#allocation3], 0
      %s31 = sshll.u32 %s0, 4
      %s32 = int_to_ptr.hbm [resolvable:$true] %s31
      %s33 = sshll.u32 [#allocation2], 4
      %s34 = int_to_ptr.vmem [resolvable:$true] %s33
      %39 = dma.hbm_to_vmem [thread:$0]  %s32, 256, %s34, [#allocation3], 32, 32, 2
    $region5: #{multihead_attention_pallas.1} parent=1 // pred_fallthru
      _
    // Predicated region
    $region6: #{multihead_attention_pallas.1} parent=1 // pred_check
      _
    $region7: #{multihead_attention_pallas.1} parent=1 // pred_check_branch
      %41 = sbr.rel (0) target = $region9
    $region8: #{multihead_attention_pallas.1} parent=1 // pred_region
      %43 = vsyncadd [#allocation6], 0
      %s44 = sshll.u32 %s1, 4
      %s45 = int_to_ptr.hbm [resolvable:$true] %s44
      %s46 = sshll.u32 [#allocation5], 4
      %s47 = int_to_ptr.vmem [resolvable:$true] %s46
      %52 = dma.hbm_to_vmem [thread:$0]  %s45, 256, %s47, [#allocation6], 32, 32, 2
    $region9: #{multihead_attention_pallas.1} parent=1 // pred_fallthru
      _
    // Predicated region
    $region10: #{multihead_attention_pallas.1} parent=1 // pred_check
      _
    $region11: #{multihead_attention_pallas.1} parent=1 // pred_check_branch
      %54 = sbr.rel (0) target = $region13
    $region12: #{multihead_attention_pallas.1} parent=1 // pred_region
      %56 = vsyncadd [#allocation6], 0
      %s57 = sshll.u32 %s2, 4
      %s58 = int_to_ptr.hbm [resolvable:$true] %s57
      %s59 = sshll.u32 [#allocation7], 4
      %s60 = int_to_ptr.vmem [resolvable:$true] %s59
      %65 = dma.hbm_to_vmem [thread:$0]  %s58, 256, %s60, [#allocation6], 32, 32, 2
    $region13: #{multihead_attention_pallas.1} parent=1 // pred_fallthru
      _
    // Predicated region
    $region14: #{multihead_attention_pallas.1} parent=1 // pred_check
      _
    $region15: #{multihead_attention_pallas.1} parent=1 // pred_check_branch
      %67 = sbr.rel (0) target = $region17
    $region16: #{multihead_attention_pallas.1} parent=1 // pred_region
      %69 = vsyncadd [#allocation9], 0
      %s70 = sshll.u32 %s3, 4
      %s71 = int_to_ptr.hbm [resolvable:$true] %s70
      %s72 = sshll.u32 [#allocation8], 4
      %s73 = int_to_ptr.vmem [resolvable:$true] %s72
      %78 = dma.hbm_to_vmem [thread:$0]  %s71, 256, %s73, [#allocation9], 32, 32, 2
    $region17: #{multihead_attention_pallas.1} parent=1 // pred_fallthru
      _
    // Predicated region
    $region18: #{multihead_attention_pallas.1} parent=1 // pred_check
      _
    $region19: #{multihead_attention_pallas.1} parent=1 // pred_check_branch
      %80 = sbr.rel (0) target = $region21
    $region20: #{multihead_attention_pallas.1} parent=1 // pred_region
      %82 = vsyncadd [#allocation9], 0
      %s83 = sshll.u32 %s4, 4
      %s84 = int_to_ptr.hbm [resolvable:$true] %s83
      %s85 = sshll.u32 [#allocation10], 4
      %s86 = int_to_ptr.vmem [resolvable:$true] %s85
      %91 = dma.hbm_to_vmem [thread:$0]  %s84, 256, %s86, [#allocation9], 32, 32, 2
    $region21: #{multihead_attention_pallas.1} parent=1 // pred_fallthru
      _
    // Predicated region
    $region22: #{multihead_attention_pallas.1} parent=1 // pred_check
      _
    $region23: #{multihead_attention_pallas.1} parent=1 // pred_check_branch
      %93 = sbr.rel (0) target = $region25
    $region24: #{multihead_attention_pallas.1} parent=1 // pred_region
      %95 = vsyncadd [#allocation12], 0
      %s96 = sshll.u32 %s5, 4
      %s97 = int_to_ptr.hbm [resolvable:$true] %s96
      %s98 = sshll.u32 [#allocation11], 4
      %s99 = int_to_ptr.vmem [resolvable:$true] %s98
      %104 = dma.hbm_to_vmem [thread:$0]  %s97, 256, %s99, [#allocation12], 32, 32, 2
    $region25: #{multihead_attention_pallas.1} parent=1 // pred_fallthru
      _
    // Predicated region
    $region26: #{multihead_attention_pallas.1} parent=1 // pred_check
      _
    $region27: #{multihead_attention_pallas.1} parent=1 // pred_check_branch
      %106 = sbr.rel (0) target = $region29
    $region28: #{multihead_attention_pallas.1} parent=1 // pred_region
      %108 = vsyncadd [#allocation12], 0
      %s109 = sshll.u32 %s6, 4
      %s110 = int_to_ptr.hbm [resolvable:$true] %s109
      %s111 = sshll.u32 [#allocation13], 4
      %s112 = int_to_ptr.vmem [resolvable:$true] %s111
      %117 = dma.hbm_to_vmem [thread:$0]  %s110, 2048, %s112, [#allocation12], 128, 128, 8
    $region29: #{multihead_attention_pallas.1} parent=1 // pred_fallthru
      _
    // Predicated region
    $region30: #{multihead_attention_pallas.1} parent=1 // pred_check
      _
    $region31: #{multihead_attention_pallas.1} parent=1 // pred_check_branch
      %119 = sbr.rel (0) target = $region33
    $region32: #{multihead_attention_pallas.1} parent=1 // pred_region
      %121 = vsyncadd [#allocation15], 0
      %s122 = sshll.u32 %s7, 4
      %s123 = int_to_ptr.hbm [resolvable:$true] %s122
      %s124 = sshll.u32 [#allocation14], 4
      %s125 = int_to_ptr.vmem [resolvable:$true] %s124
      %130 = dma.hbm_to_vmem [thread:$0]  %s123, 2048, %s125, [#allocation15], 128, 128, 8
    $region33: #{multihead_attention_pallas.1} parent=1 // pred_fallthru
      _
    // Predicated region
    $region34: #{multihead_attention_pallas.1} parent=1 // pred_check
      _
    $region35: #{multihead_attention_pallas.1} parent=1 // pred_check_branch
      %132 = sbr.rel (0) target = $region37
    $region36: #{multihead_attention_pallas.1} parent=1 // pred_region
      %134 = vsyncadd [#allocation15], 0
      %s135 = sshll.u32 %s8, 4
      %s136 = int_to_ptr.hbm [resolvable:$true] %s135
      %s137 = sshll.u32 [#allocation16], 4
      %s138 = int_to_ptr.vmem [resolvable:$true] %s137
      %143 = dma.hbm_to_vmem [thread:$0]  %s136, 2048, %s138, [#allocation15], 128, 128, 8
    $region37: #{multihead_attention_pallas.1} parent=1 // pred_fallthru
      _
    // Predicated region
    $region38: #{multihead_attention_pallas.1} parent=1 // pred_check
      _
    $region39: #{multihead_attention_pallas.1} parent=1 // pred_check_branch
      %145 = sbr.rel (0) target = $region41
    $region40: #{multihead_attention_pallas.1} parent=1 // pred_region
      %147 = vsyncadd [#allocation18], 0
      %s148 = sshll.u32 %s9, 4
      %s149 = int_to_ptr.hbm [resolvable:$true] %s148
      %s150 = sshll.u32 [#allocation17], 4
      %s151 = int_to_ptr.vmem [resolvable:$true] %s150
      %156 = dma.hbm_to_vmem [thread:$0]  %s149, 64, %s151, [#allocation18], 16, 16, 1
    $region41: #{multihead_attention_pallas.1} parent=1 // pred_fallthru
      _
    // Predicated region
    $region42: #{multihead_attention_pallas.1} parent=1 // pred_check
      _
    $region43: #{multihead_attention_pallas.1} parent=1 // pred_check_branch
      %158 = sbr.rel (0) target = $region45
    $region44: #{multihead_attention_pallas.1} parent=1 // pred_region
      %160 = vsyncadd [#allocation18], 0
      %s161 = sshll.u32 %s10, 4
      %s162 = int_to_ptr.hbm [resolvable:$true] %s161
      %s163 = sshll.u32 [#allocation19], 4
      %s164 = int_to_ptr.vmem [resolvable:$true] %s163
      %169 = dma.hbm_to_vmem [thread:$0]  %s162, 64, %s164, [#allocation18], 16, 16, 1
    $region45: #{multihead_attention_pallas.1} parent=1 // pred_fallthru
      _
    // Predicated region
    $region46: #{multihead_attention_pallas.1} parent=1 // pred_check
      _
    $region47: #{multihead_attention_pallas.1} parent=1 // pred_check_branch
      %171 = sbr.rel (0) target = $region49
    $region48: #{multihead_attention_pallas.1} parent=1 // pred_region
      _
    $region49: #{multihead_attention_pallas.1} parent=1 // pred_fallthru
      _
    // Predicated region
    $region50: #{multihead_attention_pallas.1} parent=1 // pred_check
      _
    $region51: #{multihead_attention_pallas.1} parent=1 // pred_check_branch
      %173 = sbr.rel (0) target = $region53
    $region52: #{multihead_attention_pallas.1} parent=1 // pred_region
      %175 = vsyncadd [#allocation21], 0
      %s176 = sshll.u32 %s12, 4
      %s177 = int_to_ptr.hbm [resolvable:$true] %s176
      %s178 = sshll.u32 [#allocation20], 4
      %s179 = int_to_ptr.vmem [resolvable:$true] %s178
      %184 = dma.hbm_to_vmem [thread:$0]  %s177, 512, %s179, [#allocation21], 128, 128, 8
    $region53: #{multihead_attention_pallas.1} parent=1 // pred_fallthru
      _
    // Predicated region
    $region54: #{multihead_attention_pallas.1} parent=1 // pred_check
      _
    $region55: #{multihead_attention_pallas.1} parent=1 // pred_check_branch
      %186 = sbr.rel (0) target = $region57
    $region56: #{multihead_attention_pallas.1} parent=1 // pred_region
      _
    $region57: #{multihead_attention_pallas.1} parent=1 // pred_fallthru
      _
    // Predicated region
    $region58: #{multihead_attention_pallas.1} parent=1 // pred_check
      _
    $region59: #{multihead_attention_pallas.1} parent=1 // pred_check_branch
      %188 = sbr.rel (0) target = $region61
    $region60: #{multihead_attention_pallas.1} parent=1 // pred_region
      %190 = dma.done [#allocation3], 256
    $region61: #{multihead_attention_pallas.1} parent=1 // pred_fallthru
      _
    // Predicated region
    $region62: #{multihead_attention_pallas.1} parent=1 // pred_check
      _
    $region63: #{multihead_attention_pallas.1} parent=1 // pred_check_branch
      %192 = sbr.rel (0) target = $region65
    $region64: #{multihead_attention_pallas.1} parent=1 // pred_region
      %194 = dma.done [#allocation6], 256
    $region65: #{multihead_attention_pallas.1} parent=1 // pred_fallthru
      _
    // Predicated region
    $region66: #{multihead_attention_pallas.1} parent=1 // pred_check
      _
    $region67: #{multihead_attention_pallas.1} parent=1 // pred_check_branch
      %196 = sbr.rel (0) target = $region69
    $region68: #{multihead_attention_pallas.1} parent=1 // pred_region
      %198 = dma.done [#allocation6], 256
    $region69: #{multihead_attention_pallas.1} parent=1 // pred_fallthru
      _
    // Predicated region
    $region70: #{multihead_attention_pallas.1} parent=1 // pred_check
      _
    $region71: #{multihead_attention_pallas.1} parent=1 // pred_check_branch
      %200 = sbr.rel (0) target = $region73
    $region72: #{multihead_attention_pallas.1} parent=1 // pred_region
      %202 = dma.done [#allocation9], 256
    $region73: #{multihead_attention_pallas.1} parent=1 // pred_fallthru
      _
    // Predicated region
    $region74: #{multihead_attention_pallas.1} parent=1 // pred_check
      _
    $region75: #{multihead_attention_pallas.1} parent=1 // pred_check_branch
      %204 = sbr.rel (0) target = $region77
    $region76: #{multihead_attention_pallas.1} parent=1 // pred_region
      %206 = dma.done [#allocation9], 256
    $region77: #{multihead_attention_pallas.1} parent=1 // pred_fallthru
      _
    // Predicated region
    $region78: #{multihead_attention_pallas.1} parent=1 // pred_check
      _
    $region79: #{multihead_attention_pallas.1} parent=1 // pred_check_branch
      %208 = sbr.rel (0) target = $region81
    $region80: #{multihead_attention_pallas.1} parent=1 // pred_region
      %210 = dma.done [#allocation12], 256
    $region81: #{multihead_attention_pallas.1} parent=1 // pred_fallthru
      _
    // Predicated region
    $region82: #{multihead_attention_pallas.1} parent=1 // pred_check
      _
    $region83: #{multihead_attention_pallas.1} parent=1 // pred_check_branch
      %212 = sbr.rel (0) target = $region85
    $region84: #{multihead_attention_pallas.1} parent=1 // pred_region
      %214 = dma.done [#allocation12], 2048
    $region85: #{multihead_attention_pallas.1} parent=1 // pred_fallthru
      _
    // Predicated region
    $region86: #{multihead_attention_pallas.1} parent=1 // pred_check
      _
    $region87: #{multihead_attention_pallas.1} parent=1 // pred_check_branch
      %216 = sbr.rel (0) target = $region89
    $region88: #{multihead_attention_pallas.1} parent=1 // pred_region
      %218 = dma.done [#allocation15], 2048
    $region89: #{multihead_attention_pallas.1} parent=1 // pred_fallthru
      _
    // Predicated region
    $region90: #{multihead_attention_pallas.1} parent=1 // pred_check
      _
    $region91: #{multihead_attention_pallas.1} parent=1 // pred_check_branch
      %220 = sbr.rel (0) target = $region93
    $region92: #{multihead_attention_pallas.1} parent=1 // pred_region
      %222 = dma.done [#allocation15], 2048
    $region93: #{multihead_attention_pallas.1} parent=1 // pred_fallthru
      _
    // Predicated region
    $region94: #{multihead_attention_pallas.1} parent=1 // pred_check
      _
    $region95: #{multihead_attention_pallas.1} parent=1 // pred_check_branch
      %224 = sbr.rel (0) target = $region97
    $region96: #{multihead_attention_pallas.1} parent=1 // pred_region
      %226 = dma.done [#allocation18], 64
    $region97: #{multihead_attention_pallas.1} parent=1 // pred_fallthru
      _
    // Predicated region
    $region98: #{multihead_attention_pallas.1} parent=1 // pred_check
      _
    $region99: #{multihead_attention_pallas.1} parent=1 // pred_check_branch
      %228 = sbr.rel (0) target = $region101
    $region100: #{multihead_attention_pallas.1} parent=1 // pred_region
      %230 = dma.done [#allocation18], 64
    $region101: #{multihead_attention_pallas.1} parent=1 // pred_fallthru
      _
    // Predicated region
    $region102: #{multihead_attention_pallas.1} parent=1 // pred_check
      _
    $region103: #{multihead_attention_pallas.1} parent=1 // pred_check_branch
      %232 = sbr.rel (0) target = $region105
    $region104: #{multihead_attention_pallas.1} parent=1 // pred_region
      %234 = dma.done [#allocation21], 512
    $region105: #{multihead_attention_pallas.1} parent=1 // pred_fallthru
      _
    %v235 = vld [vmem:[#allocation13] sm:$0xff]
    %v236 = vld [vmem:[#allocation13 + $0x8] sm:$0xff]
    %v237 = vld [vmem:[#allocation13 + $0x10] sm:$0xff]
    %v238 = vld [vmem:[#allocation13 + $0x18] sm:$0xff]
    %v239 = vld [vmem:[#allocation13 + $0x20] sm:$0xff]
    %v240 = vld [vmem:[#allocation13 + $0x28] sm:$0xff]
    %v241 = vld [vmem:[#allocation13 + $0x30] sm:$0xff]
    %v242 = vld [vmem:[#allocation13 + $0x38] sm:$0xff]
    %v243 = vld [vmem:[#allocation13 + $0x40] sm:$0xff]
    %v244 = vld [vmem:[#allocation13 + $0x48] sm:$0xff]
    %v245 = vld [vmem:[#allocation13 + $0x50] sm:$0xff]
    %v246 = vld [vmem:[#allocation13 + $0x58] sm:$0xff]
    %v247 = vld [vmem:[#allocation13 + $0x60] sm:$0xff]
    %v248 = vld [vmem:[#allocation13 + $0x68] sm:$0xff]
    %v249 = vld [vmem:[#allocation13 + $0x70] sm:$0xff]
    %v250 = vld [vmem:[#allocation13 + $0x78] sm:$0xff]
    %v251 = vld [vmem:[#allocation14] sm:$0xff]
    %v252 = vld [vmem:[#allocation14 + $0x8] sm:$0xff]
    %v253 = vld [vmem:[#allocation14 + $0x10] sm:$0xff]
    %v254 = vld [vmem:[#allocation14 + $0x18] sm:$0xff]
    %v255 = vld [vmem:[#allocation14 + $0x20] sm:$0xff]
    %v256 = vld [vmem:[#allocation14 + $0x28] sm:$0xff]
    %v257 = vld [vmem:[#allocation14 + $0x30] sm:$0xff]
    %v258 = vld [vmem:[#allocation14 + $0x38] sm:$0xff]
    %v259 = vld [vmem:[#allocation14 + $0x40] sm:$0xff]
    %v260 = vld [vmem:[#allocation14 + $0x48] sm:$0xff]
    %v261 = vld [vmem:[#allocation14 + $0x50] sm:$0xff]
    %v262 = vld [vmem:[#allocation14 + $0x58] sm:$0xff]
    %v263 = vld [vmem:[#allocation14 + $0x60] sm:$0xff]
    %v264 = vld [vmem:[#allocation14 + $0x68] sm:$0xff]
    %v265 = vld [vmem:[#allocation14 + $0x70] sm:$0xff]
    %v266 = vld [vmem:[#allocation14 + $0x78] sm:$0xff]
    %v267 = vld [vmem:[#allocation16] sm:$0xff]
    %v268 = vld [vmem:[#allocation16 + $0x8] sm:$0xff]
    %v269 = vld [vmem:[#allocation16 + $0x10] sm:$0xff]
    %v270 = vld [vmem:[#allocation16 + $0x18] sm:$0xff]
    %v271 = vld [vmem:[#allocation16 + $0x20] sm:$0xff]
    %v272 = vld [vmem:[#allocation16 + $0x28] sm:$0xff]
    %v273 = vld [vmem:[#allocation16 + $0x30] sm:$0xff]
    %v274 = vld [vmem:[#allocation16 + $0x38] sm:$0xff]
    %v275 = vld [vmem:[#allocation16 + $0x40] sm:$0xff]
    %v276 = vld [vmem:[#allocation16 + $0x48] sm:$0xff]
    %v277 = vld [vmem:[#allocation16 + $0x50] sm:$0xff]
    %v278 = vld [vmem:[#allocation16 + $0x58] sm:$0xff]
    %v279 = vld [vmem:[#allocation16 + $0x60] sm:$0xff]
    %v280 = vld [vmem:[#allocation16 + $0x68] sm:$0xff]
    %v281 = vld [vmem:[#allocation16 + $0x70] sm:$0xff]
    %v282 = vld [vmem:[#allocation16 + $0x78] sm:$0xff]
    %v283 = vld [vmem:[#allocation17] sm:$0x1]
    %v284 = vld [vmem:[#allocation17 + $0x1] sm:$0x1]
    %v285 = vld [vmem:[#allocation17 + $0x2] sm:$0x1]
    %v286 = vld [vmem:[#allocation17 + $0x3] sm:$0x1]
    %v287 = vld [vmem:[#allocation19] sm:$0x1]
    %v288 = vld [vmem:[#allocation19 + $0x1] sm:$0x1]
    %v289 = vld [vmem:[#allocation19 + $0x2] sm:$0x1]
    %v290 = vld [vmem:[#allocation19 + $0x3] sm:$0x1]
    %v291 = vld [vmem:[%s11] sm:$0x1]
    %v292 = vld [vmem:[%s11 + $0x1] sm:$0x1]
    %v293 = vld [vmem:[%s11 + $0x2] sm:$0x1]
    %v294 = vld [vmem:[%s11 + $0x3] sm:$0x1]
    %v295 = vld [vmem:[#allocation20] sm:$0xff]
    %v296 = vld [vmem:[#allocation20 + $0x8] sm:$0xff]
    %v297 = vld [vmem:[#allocation20 + $0x10] sm:$0xff]
    %v298 = vld [vmem:[#allocation20 + $0x18] sm:$0xff]
    %v299 = vld [vmem:[%s13] sm:$0x1]
    %v300 = vld [vmem:[#allocation2] sm:$0x1]
    %v301 = vld [vmem:[#allocation2 + $0x2] sm:$0x1]
    %v302 = vld [vmem:[#allocation2 + $0x4] sm:$0x1]
    %v303 = vld [vmem:[#allocation2 + $0x6] sm:$0x1]
    %v304 = vld [vmem:[#allocation2 + $0x8] sm:$0x1]
    %v305 = vld [vmem:[#allocation2 + $0xa] sm:$0x1]
    %v306 = vld [vmem:[#allocation2 + $0xc] sm:$0x1]
    %v307 = vld [vmem:[#allocation2 + $0xe] sm:$0x1]
    %v308 = vld [vmem:[#allocation5] sm:$0x1]
    %v309 = vld [vmem:[#allocation5 + $0x2] sm:$0x1]
    %v310 = vld [vmem:[#allocation5 + $0x4] sm:$0x1]
    %v311 = vld [vmem:[#allocation5 + $0x6] sm:$0x1]
    %v312 = vld [vmem:[#allocation5 + $0x8] sm:$0x1]
    %v313 = vld [vmem:[#allocation5 + $0xa] sm:$0x1]
    %v314 = vld [vmem:[#allocation5 + $0xc] sm:$0x1]
    %v315 = vld [vmem:[#allocation5 + $0xe] sm:$0x1]
    %v316 = vld [vmem:[#allocation7] sm:$0x1]
    %v317 = vld [vmem:[#allocation7 + $0x2] sm:$0x1]
    %v318 = vld [vmem:[#allocation7 + $0x4] sm:$0x1]
    %v319 = vld [vmem:[#allocation7 + $0x6] sm:$0x1]
    %v320 = vld [vmem:[#allocation7 + $0x8] sm:$0x1]
    %v321 = vld [vmem:[#allocation7 + $0xa] sm:$0x1]
    %v322 = vld [vmem:[#allocation7 + $0xc] sm:$0x1]
    %v323 = vld [vmem:[#allocation7 + $0xe] sm:$0x1]
    %v324 = vld [vmem:[#allocation10] sm:$0x1]
    %v325 = vld [vmem:[#allocation10 + $0x2] sm:$0x1]
    %v326 = vld [vmem:[#allocation10 + $0x4] sm:$0x1]
    %v327 = vld [vmem:[#allocation10 + $0x6] sm:$0x1]
    %v328 = vld [vmem:[#allocation10 + $0x8] sm:$0x1]
    %v329 = vld [vmem:[#allocation10 + $0xa] sm:$0x1]
    %v330 = vld [vmem:[#allocation10 + $0xc] sm:$0x1]
    %v331 = vld [vmem:[#allocation10 + $0xe] sm:$0x1]
    %v332 = vadd.f32 %v300, %v324
    %v333 = vadd.f32 %v301, %v325
    %v334 = vadd.f32 %v302, %v326
    %v335 = vadd.f32 %v303, %v327
    %v336 = vadd.f32 %v304, %v328
    %v337 = vadd.f32 %v305, %v329
    %v338 = vadd.f32 %v306, %v330
    %v339 = vadd.f32 %v307, %v331
    %v340 = vld [vmem:[#allocation11] sm:$0x1]
    %v341 = vld [vmem:[#allocation11 + $0x2] sm:$0x1]
    %v342 = vld [vmem:[#allocation11 + $0x4] sm:$0x1]
    %v343 = vld [vmem:[#allocation11 + $0x6] sm:$0x1]
    %v344 = vld [vmem:[#allocation11 + $0x8] sm:$0x1]
    %v345 = vld [vmem:[#allocation11 + $0xa] sm:$0x1]
    %v346 = vld [vmem:[#allocation11 + $0xc] sm:$0x1]
    %v347 = vld [vmem:[#allocation11 + $0xe] sm:$0x1]
    %v348 = vadd.f32 %v308, %v340
    %v349 = vadd.f32 %v309, %v341
    %v350 = vadd.f32 %v310, %v342
    %v351 = vadd.f32 %v311, %v343
    %v352 = vadd.f32 %v312, %v344
    %v353 = vadd.f32 %v313, %v345
    %v354 = vadd.f32 %v314, %v346
    %v355 = vadd.f32 %v315, %v347
    %v360 = vperm.slane %v283, 0
    %v361 = vperm.slane %v284, 0
    %v362 = vperm.slane %v285, 0
    %v363 = vperm.slane %v286, 0
    %v376 = vrot.slane %v333, 7
    %vm377 = vcmask 1041409
    %v378 = vsel %vm377, %v376, %v332
    %v379 = vrot.slane %v334, 6
    %vm380 = vcmask 1042434
    %v381 = vsel %vm380, %v379, %v378
    %v382 = vrot.slane %v335, 5
    %vm383 = vcmask 1043459
    %v384 = vsel %vm383, %v382, %v381
    %v385 = vrot.slane %v336, 4
    %vm386 = vcmask 1044484
    %v387 = vsel %vm386, %v385, %v384
    %v388 = vrot.slane %v337, 3
    %vm389 = vcmask 1045509
    %v390 = vsel %vm389, %v388, %v387
    %v391 = vrot.slane %v338, 2
    %vm392 = vcmask 1046534
    %v393 = vsel %vm392, %v391, %v390
    %v394 = vrot.slane %v339, 1
    %vm395 = vcmask 1047559
    %v396 = vsel %vm395, %v394, %v393
    %vm397 = vcmask 261120
    %v398 = vsel %vm397, %v396, 0
    %400 = vmatpush.msra.mxu0 0.0
    %401 = vmatpush.msra.mxu0 0.0
    %402 = vmatpush.msra.mxu0 0.0
    %403 = vmatpush.msra.mxu0 0.0
    %404 = vmatpush.msra.mxu0 0.0
    %405 = vmatpush.msra.mxu0 0.0
    %406 = vmatpush.msra.mxu0 0.0
    %407 = vmatpush.msra.mxu0 0.0
    %408 = vmatpush.msra.mxu0 0.0
    %409 = vmatpush.msra.mxu0 0.0
    %410 = vmatpush.msra.mxu0 0.0
    %411 = vmatpush.msra.mxu0 0.0
    %412 = vmatpush.msra.mxu0 %v238
    %413 = vmatpush.msra.mxu0 %v237
    %414 = vmatpush.msra.mxu0 %v236
    %415 = vmatpush.msra.mxu0 %v235
    %416 = vmatmul.f32.gmra.mxu0 %v398
    %v417 = vpop.f32.mrf.mxu0
    %v418 = vadd.f32 %v360, %v417
    %419 = vdwg.mxu0
    %420 = vmatpush.msra.mxu0 0.0
    %421 = vmatpush.msra.mxu0 0.0
    %422 = vmatpush.msra.mxu0 0.0
    %423 = vmatpush.msra.mxu0 0.0
    %424 = vmatpush.msra.mxu0 0.0
    %425 = vmatpush.msra.mxu0 0.0
    %426 = vmatpush.msra.mxu0 0.0
    %427 = vmatpush.msra.mxu0 0.0
    %428 = vmatpush.msra.mxu0 0.0
    %429 = vmatpush.msra.mxu0 0.0
    %430 = vmatpush.msra.mxu0 0.0
    %431 = vmatpush.msra.mxu0 0.0
    %432 = vmatpush.msra.mxu0 %v242
    %433 = vmatpush.msra.mxu0 %v241
    %434 = vmatpush.msra.mxu0 %v240
    %435 = vmatpush.msra.mxu0 %v239
    %436 = vmatmul.f32.gmra.mxu0 %v398
    %v437 = vpop.f32.mrf.mxu0
    %v438 = vadd.f32 %v361, %v437
    %439 = vdwg.mxu0
    %440 = vmatpush.msra.mxu0 0.0
    %441 = vmatpush.msra.mxu0 0.0
    %442 = vmatpush.msra.mxu0 0.0
    %443 = vmatpush.msra.mxu0 0.0
    %444 = vmatpush.msra.mxu0 0.0
    %445 = vmatpush.msra.mxu0 0.0
    %446 = vmatpush.msra.mxu0 0.0
    %447 = vmatpush.msra.mxu0 0.0
    %448 = vmatpush.msra.mxu0 0.0
    %449 = vmatpush.msra.mxu0 0.0
    %450 = vmatpush.msra.mxu0 0.0
    %451 = vmatpush.msra.mxu0 0.0
    %452 = vmatpush.msra.mxu0 %v246
    %453 = vmatpush.msra.mxu0 %v245
    %454 = vmatpush.msra.mxu0 %v244
    %455 = vmatpush.msra.mxu0 %v243
    %456 = vmatmul.f32.gmra.mxu0 %v398
    %v457 = vpop.f32.mrf.mxu0
    %v458 = vadd.f32 %v362, %v457
    %459 = vdwg.mxu0
    %460 = vmatpush.msra.mxu0 0.0
    %461 = vmatpush.msra.mxu0 0.0
    %462 = vmatpush.msra.mxu0 0.0
    %463 = vmatpush.msra.mxu0 0.0
    %464 = vmatpush.msra.mxu0 0.0
    %465 = vmatpush.msra.mxu0 0.0
    %466 = vmatpush.msra.mxu0 0.0
    %467 = vmatpush.msra.mxu0 0.0
    %468 = vmatpush.msra.mxu0 0.0
    %469 = vmatpush.msra.mxu0 0.0
    %470 = vmatpush.msra.mxu0 0.0
    %471 = vmatpush.msra.mxu0 0.0
    %472 = vmatpush.msra.mxu0 %v250
    %473 = vmatpush.msra.mxu0 %v249
    %474 = vmatpush.msra.mxu0 %v248
    %475 = vmatpush.msra.mxu0 %v247
    %476 = vmatmul.f32.gmra.mxu0 %v398
    %v477 = vpop.f32.mrf.mxu0
    %v478 = vadd.f32 %v363, %v477
    %479 = vdwg.mxu0
    %v484 = vperm.slane %v287, 0
    %v485 = vperm.slane %v288, 0
    %v486 = vperm.slane %v289, 0
    %v487 = vperm.slane %v290, 0
    %v500 = vrot.slane %v349, 7
    %v501 = vsel %vm377, %v500, %v348
    %v502 = vrot.slane %v350, 6
    %v503 = vsel %vm380, %v502, %v501
    %v504 = vrot.slane %v351, 5
    %v505 = vsel %vm383, %v504, %v503
    %v506 = vrot.slane %v352, 4
    %v507 = vsel %vm386, %v506, %v505
    %v508 = vrot.slane %v353, 3
    %v509 = vsel %vm389, %v508, %v507
    %v510 = vrot.slane %v354, 2
    %v511 = vsel %vm392, %v510, %v509
    %v512 = vrot.slane %v355, 1
    %v513 = vsel %vm395, %v512, %v511
    %v514 = vsel %vm397, %v513, 0
    %516 = vmatpush.msra.mxu0 0.0
    %517 = vmatpush.msra.mxu0 0.0
    %518 = vmatpush.msra.mxu0 0.0
    %519 = vmatpush.msra.mxu0 0.0
    %520 = vmatpush.msra.mxu0 0.0
    %521 = vmatpush.msra.mxu0 0.0
    %522 = vmatpush.msra.mxu0 0.0
    %523 = vmatpush.msra.mxu0 0.0
    %524 = vmatpush.msra.mxu0 0.0
    %525 = vmatpush.msra.mxu0 0.0
    %526 = vmatpush.msra.mxu0 0.0
    %527 = vmatpush.msra.mxu0 0.0
    %528 = vmatpush.msra.mxu0 %v254
    %529 = vmatpush.msra.mxu0 %v253
    %530 = vmatpush.msra.mxu0 %v252
    %531 = vmatpush.msra.mxu0 %v251
    %532 = vmatmul.f32.gmra.mxu0 %v514
    %v533 = vpop.f32.mrf.mxu0
    %v534 = vadd.f32 %v484, %v533
    %535 = vdwg.mxu0
    %536 = vmatpush.msra.mxu0 0.0
    %537 = vmatpush.msra.mxu0 0.0
    %538 = vmatpush.msra.mxu0 0.0
    %539 = vmatpush.msra.mxu0 0.0
    %540 = vmatpush.msra.mxu0 0.0
    %541 = vmatpush.msra.mxu0 0.0
    %542 = vmatpush.msra.mxu0 0.0
    %543 = vmatpush.msra.mxu0 0.0
    %544 = vmatpush.msra.mxu0 0.0
    %545 = vmatpush.msra.mxu0 0.0
    %546 = vmatpush.msra.mxu0 0.0
    %547 = vmatpush.msra.mxu0 0.0
    %548 = vmatpush.msra.mxu0 %v258
    %549 = vmatpush.msra.mxu0 %v257
    %550 = vmatpush.msra.mxu0 %v256
    %551 = vmatpush.msra.mxu0 %v255
    %552 = vmatmul.f32.gmra.mxu0 %v514
    %v553 = vpop.f32.mrf.mxu0
    %v554 = vadd.f32 %v485, %v553
    %555 = vdwg.mxu0
    %556 = vmatpush.msra.mxu0 0.0
    %557 = vmatpush.msra.mxu0 0.0
    %558 = vmatpush.msra.mxu0 0.0
    %559 = vmatpush.msra.mxu0 0.0
    %560 = vmatpush.msra.mxu0 0.0
    %561 = vmatpush.msra.mxu0 0.0
    %562 = vmatpush.msra.mxu0 0.0
    %563 = vmatpush.msra.mxu0 0.0
    %564 = vmatpush.msra.mxu0 0.0
    %565 = vmatpush.msra.mxu0 0.0
    %566 = vmatpush.msra.mxu0 0.0
    %567 = vmatpush.msra.mxu0 0.0
    %568 = vmatpush.msra.mxu0 %v262
    %569 = vmatpush.msra.mxu0 %v261
    %570 = vmatpush.msra.mxu0 %v260
    %571 = vmatpush.msra.mxu0 %v259
    %572 = vmatmul.f32.gmra.mxu0 %v514
    %v573 = vpop.f32.mrf.mxu0
    %v574 = vadd.f32 %v486, %v573
    %575 = vdwg.mxu0
    %576 = vmatpush.msra.mxu0 0.0
    %577 = vmatpush.msra.mxu0 0.0
    %578 = vmatpush.msra.mxu0 0.0
    %579 = vmatpush.msra.mxu0 0.0
    %580 = vmatpush.msra.mxu0 0.0
    %581 = vmatpush.msra.mxu0 0.0
    %582 = vmatpush.msra.mxu0 0.0
    %583 = vmatpush.msra.mxu0 0.0
    %584 = vmatpush.msra.mxu0 0.0
    %585 = vmatpush.msra.mxu0 0.0
    %586 = vmatpush.msra.mxu0 0.0
    %587 = vmatpush.msra.mxu0 0.0
    %588 = vmatpush.msra.mxu0 %v266
    %589 = vmatpush.msra.mxu0 %v265
    %590 = vmatpush.msra.mxu0 %v264
    %591 = vmatpush.msra.mxu0 %v263
    %592 = vmatmul.f32.gmra.mxu0 %v514
    %v593 = vpop.f32.mrf.mxu0
    %v594 = vadd.f32 %v487, %v593
    %595 = vdwg.mxu0
    %v600 = vperm.slane %v291, 0
    %v601 = vperm.slane %v292, 0
    %v602 = vperm.slane %v293, 0
    %v603 = vperm.slane %v294, 0
    %v616 = vrot.slane %v317, 7
    %v617 = vsel %vm377, %v616, %v316
    %v618 = vrot.slane %v318, 6
    %v619 = vsel %vm380, %v618, %v617
    %v620 = vrot.slane %v319, 5
    %v621 = vsel %vm383, %v620, %v619
    %v622 = vrot.slane %v320, 4
    %v623 = vsel %vm386, %v622, %v621
    %v624 = vrot.slane %v321, 3
    %v625 = vsel %vm389, %v624, %v623
    %v626 = vrot.slane %v322, 2
    %v627 = vsel %vm392, %v626, %v625
    %v628 = vrot.slane %v323, 1
    %v629 = vsel %vm395, %v628, %v627
    %v630 = vsel %vm397, %v629, 0
    %632 = vmatpush.msra.mxu0 0.0
    %633 = vmatpush.msra.mxu0 0.0
    %634 = vmatpush.msra.mxu0 0.0
    %635 = vmatpush.msra.mxu0 0.0
    %636 = vmatpush.msra.mxu0 0.0
    %637 = vmatpush.msra.mxu0 0.0
    %638 = vmatpush.msra.mxu0 0.0
    %639 = vmatpush.msra.mxu0 0.0
    %640 = vmatpush.msra.mxu0 0.0
    %641 = vmatpush.msra.mxu0 0.0
    %642 = vmatpush.msra.mxu0 0.0
    %643 = vmatpush.msra.mxu0 0.0
    %644 = vmatpush.msra.mxu0 %v270
    %645 = vmatpush.msra.mxu0 %v269
    %646 = vmatpush.msra.mxu0 %v268
    %647 = vmatpush.msra.mxu0 %v267
    %648 = vmatmul.f32.gmra.mxu0 %v630
    %v649 = vpop.f32.mrf.mxu0
    %v650 = vadd.f32 %v600, %v649
    %651 = vdwg.mxu0
    %652 = vmatpush.msra.mxu0 0.0
    %653 = vmatpush.msra.mxu0 0.0
    %654 = vmatpush.msra.mxu0 0.0
    %655 = vmatpush.msra.mxu0 0.0
    %656 = vmatpush.msra.mxu0 0.0
    %657 = vmatpush.msra.mxu0 0.0
    %658 = vmatpush.msra.mxu0 0.0
    %659 = vmatpush.msra.mxu0 0.0
    %660 = vmatpush.msra.mxu0 0.0
    %661 = vmatpush.msra.mxu0 0.0
    %662 = vmatpush.msra.mxu0 0.0
    %663 = vmatpush.msra.mxu0 0.0
    %664 = vmatpush.msra.mxu0 %v274
    %665 = vmatpush.msra.mxu0 %v273
    %666 = vmatpush.msra.mxu0 %v272
    %667 = vmatpush.msra.mxu0 %v271
    %668 = vmatmul.f32.gmra.mxu0 %v630
    %v669 = vpop.f32.mrf.mxu0
    %v670 = vadd.f32 %v601, %v669
    %671 = vdwg.mxu0
    %672 = vmatpush.msra.mxu0 0.0
    %673 = vmatpush.msra.mxu0 0.0
    %674 = vmatpush.msra.mxu0 0.0
    %675 = vmatpush.msra.mxu0 0.0
    %676 = vmatpush.msra.mxu0 0.0
    %677 = vmatpush.msra.mxu0 0.0
    %678 = vmatpush.msra.mxu0 0.0
    %679 = vmatpush.msra.mxu0 0.0
    %680 = vmatpush.msra.mxu0 0.0
    %681 = vmatpush.msra.mxu0 0.0
    %682 = vmatpush.msra.mxu0 0.0
    %683 = vmatpush.msra.mxu0 0.0
    %684 = vmatpush.msra.mxu0 %v278
    %685 = vmatpush.msra.mxu0 %v277
    %686 = vmatpush.msra.mxu0 %v276
    %687 = vmatpush.msra.mxu0 %v275
    %688 = vmatmul.f32.gmra.mxu0 %v630
    %v689 = vpop.f32.mrf.mxu0
    %v690 = vadd.f32 %v602, %v689
    %691 = vdwg.mxu0
    %692 = vmatpush.msra.mxu0 0.0
    %693 = vmatpush.msra.mxu0 0.0
    %694 = vmatpush.msra.mxu0 0.0
    %695 = vmatpush.msra.mxu0 0.0
    %696 = vmatpush.msra.mxu0 0.0
    %697 = vmatpush.msra.mxu0 0.0
    %698 = vmatpush.msra.mxu0 0.0
    %699 = vmatpush.msra.mxu0 0.0
    %700 = vmatpush.msra.mxu0 0.0
    %701 = vmatpush.msra.mxu0 0.0
    %702 = vmatpush.msra.mxu0 0.0
    %703 = vmatpush.msra.mxu0 0.0
    %704 = vmatpush.msra.mxu0 %v282
    %705 = vmatpush.msra.mxu0 %v281
    %706 = vmatpush.msra.mxu0 %v280
    %707 = vmatpush.msra.mxu0 %v279
    %708 = vmatmul.f32.gmra.mxu0 %v630
    %v709 = vpop.f32.mrf.mxu0
    %v710 = vadd.f32 %v603, %v709
    %711 = vdwg.mxu0
    %vm712 = vcmask 64512
    %v714 = vsel %vm712, %v418, 0
    %v717 = vsel %vm712, %v534, 0
    %719 = vmatpush.xpose.msra.mxu0 0.0
    %720 = vmatpush.xpose.msra.mxu0 0.0
    %721 = vmatpush.xpose.msra.mxu0 0.0
    %722 = vmatpush.xpose.msra.mxu0 0.0
    %723 = vmatpush.xpose.msra.mxu0 0.0
    %724 = vmatpush.xpose.msra.mxu0 0.0
    %725 = vmatpush.xpose.msra.mxu0 0.0
    %726 = vmatpush.xpose.msra.mxu0 0.0
    %727 = vmatpush.xpose.msra.mxu0 0.0
    %728 = vmatpush.xpose.msra.mxu0 0.0
    %729 = vmatpush.xpose.msra.mxu0 0.0
    %730 = vmatpush.xpose.msra.mxu0 0.0
    %731 = vmatpush.xpose.msra.mxu0 0.0
    %732 = vmatpush.xpose.msra.mxu0 0.0
    %733 = vmatpush.xpose.msra.mxu0 0.0
    %734 = vmatpush.xpose.msra.mxu0 %v717
    %735 = vmatmul.f32.gmra.mxu0 %v714
    %v736 = vpop.f32.mrf.mxu0
    %v737 = vadd.f32 0.0, %v736
    %738 = vdwg.mxu0
    %v740 = vsel %vm712, %v438, 0
    %v743 = vsel %vm712, %v554, 0
    %745 = vmatpush.xpose.msra.mxu0 0.0
    %746 = vmatpush.xpose.msra.mxu0 0.0
    %747 = vmatpush.xpose.msra.mxu0 0.0
    %748 = vmatpush.xpose.msra.mxu0 0.0
    %749 = vmatpush.xpose.msra.mxu0 0.0
    %750 = vmatpush.xpose.msra.mxu0 0.0
    %751 = vmatpush.xpose.msra.mxu0 0.0
    %752 = vmatpush.xpose.msra.mxu0 0.0
    %753 = vmatpush.xpose.msra.mxu0 0.0
    %754 = vmatpush.xpose.msra.mxu0 0.0
    %755 = vmatpush.xpose.msra.mxu0 0.0
    %756 = vmatpush.xpose.msra.mxu0 0.0
    %757 = vmatpush.xpose.msra.mxu0 0.0
    %758 = vmatpush.xpose.msra.mxu0 0.0
    %759 = vmatpush.xpose.msra.mxu0 0.0
    %760 = vmatpush.xpose.msra.mxu0 %v743
    %761 = vmatmul.f32.gmra.mxu0 %v740
    %v762 = vpop.f32.mrf.mxu0
    %v763 = vadd.f32 0.0, %v762
    %764 = vdwg.mxu0
    %v766 = vsel %vm712, %v458, 0
    %v769 = vsel %vm712, %v574, 0
    %771 = vmatpush.xpose.msra.mxu0 0.0
    %772 = vmatpush.xpose.msra.mxu0 0.0
    %773 = vmatpush.xpose.msra.mxu0 0.0
    %774 = vmatpush.xpose.msra.mxu0 0.0
    %775 = vmatpush.xpose.msra.mxu0 0.0
    %776 = vmatpush.xpose.msra.mxu0 0.0
    %777 = vmatpush.xpose.msra.mxu0 0.0
    %778 = vmatpush.xpose.msra.mxu0 0.0
    %779 = vmatpush.xpose.msra.mxu0 0.0
    %780 = vmatpush.xpose.msra.mxu0 0.0
    %781 = vmatpush.xpose.msra.mxu0 0.0
    %782 = vmatpush.xpose.msra.mxu0 0.0
    %783 = vmatpush.xpose.msra.mxu0 0.0
    %784 = vmatpush.xpose.msra.mxu0 0.0
    %785 = vmatpush.xpose.msra.mxu0 0.0
    %786 = vmatpush.xpose.msra.mxu0 %v769
    %787 = vmatmul.f32.gmra.mxu0 %v766
    %v788 = vpop.f32.mrf.mxu0
    %v789 = vadd.f32 0.0, %v788
    %790 = vdwg.mxu0
    %v792 = vsel %vm712, %v478, 0
    %v795 = vsel %vm712, %v594, 0
    %797 = vmatpush.xpose.msra.mxu0 0.0
    %798 = vmatpush.xpose.msra.mxu0 0.0
    %799 = vmatpush.xpose.msra.mxu0 0.0
    %800 = vmatpush.xpose.msra.mxu0 0.0
    %801 = vmatpush.xpose.msra.mxu0 0.0
    %802 = vmatpush.xpose.msra.mxu0 0.0
    %803 = vmatpush.xpose.msra.mxu0 0.0
    %804 = vmatpush.xpose.msra.mxu0 0.0
    %805 = vmatpush.xpose.msra.mxu0 0.0
    %806 = vmatpush.xpose.msra.mxu0 0.0
    %807 = vmatpush.xpose.msra.mxu0 0.0
    %808 = vmatpush.xpose.msra.mxu0 0.0
    %809 = vmatpush.xpose.msra.mxu0 0.0
    %810 = vmatpush.xpose.msra.mxu0 0.0
    %811 = vmatpush.xpose.msra.mxu0 0.0
    %812 = vmatpush.xpose.msra.mxu0 %v795
    %813 = vmatmul.f32.gmra.mxu0 %v792
    %v814 = vpop.f32.mrf.mxu0
    %v815 = vadd.f32 0.0, %v814
    %816 = vdwg.mxu0
    %v817 = vsel %vm712, %v737, -inf
    %818 = vmax.xlane.f32.xlu0 %v817
    %v819 = vpop.xlane.xlu0 %818
    %v820 = vsel %vm712, %v763, -inf
    %821 = vmax.xlane.f32.xlu0 %v820
    %v822 = vpop.xlane.xlu0 %821
    %v823 = vsel %vm712, %v789, -inf
    %824 = vmax.xlane.f32.xlu0 %v823
    %v825 = vpop.xlane.xlu0 %824
    %v826 = vsel %vm712, %v815, -inf
    %827 = vmax.xlane.f32.xlu0 %v826
    %v828 = vpop.xlane.xlu0 %827
    %v829 = vsub.f32 %v737, %v819
    %v830 = vsub.f32 %v763, %v822
    %v831 = vsub.f32 %v789, %v825
    %v832 = vsub.f32 %v815, %v828
    %v833 = vmul.f32 %v829, 1.442695
    %v834 = vpow.pop %v833
    %v835 = vmul.f32 %v830, 1.442695
    %v836 = vpow.pop %v835
    %v837 = vmul.f32 %v831, 1.442695
    %v838 = vpow.pop %v837
    %v839 = vmul.f32 %v832, 1.442695
    %v840 = vpow.pop %v839
    %v841 = vsel %vm712, %v834, 0.0
    %842 = vadd.xlane.f32.xlu0 %v841
    %v843 = vpop.xlane.xlu0 %842
    %v844 = vsel %vm712, %v836, 0.0
    %845 = vadd.xlane.f32.xlu0 %v844
    %v846 = vpop.xlane.xlu0 %845
    %v847 = vsel %vm712, %v838, 0.0
    %848 = vadd.xlane.f32.xlu0 %v847
    %v849 = vpop.xlane.xlu0 %848
    %v850 = vsel %vm712, %v840, 0.0
    %851 = vadd.xlane.f32.xlu0 %v850
    %v852 = vpop.xlane.xlu0 %851
    %v853 = vrcp.pop %v843
    %v854 = vmul.f32 %v843, %v853
    %v855 = vsub.f32 1.0, %v854
    %v856 = vmul.f32 %v853, %v855
    %v857 = vadd.f32 %v853, %v856
    %vm858 = vweird.f32 %v843
    %vm859 = vweird.f32 %v853
    %vm860 = vmor %vm858, %vm859
    %v861 = vsel %vm860, %v853, %v857
    %v862 = vand.u32 2147483647, %v843
    %vm863 = vcmp.eq.f32.partialorder %v862, 8.507059e+37
    %v864 = vand.u32 %v843, 2147483648
    %v865 = vor.u32 1.1754944e-38, %v864
    %v866 = vsel %vm863, %v865, %v861
    %v867 = vrcp.pop %v846
    %v868 = vmul.f32 %v846, %v867
    %v869 = vsub.f32 1.0, %v868
    %v870 = vmul.f32 %v867, %v869
    %v871 = vadd.f32 %v867, %v870
    %vm872 = vweird.f32 %v846
    %vm873 = vweird.f32 %v867
    %vm874 = vmor %vm872, %vm873
    %v875 = vsel %vm874, %v867, %v871
    %v876 = vand.u32 2147483647, %v846
    %vm877 = vcmp.eq.f32.partialorder %v876, 8.507059e+37
    %v878 = vand.u32 %v846, 2147483648
    %v879 = vor.u32 1.1754944e-38, %v878
    %v880 = vsel %vm877, %v879, %v875
    %v881 = vrcp.pop %v849
    %v882 = vmul.f32 %v849, %v881
    %v883 = vsub.f32 1.0, %v882
    %v884 = vmul.f32 %v881, %v883
    %v885 = vadd.f32 %v881, %v884
    %vm886 = vweird.f32 %v849
    %vm887 = vweird.f32 %v881
    %vm888 = vmor %vm886, %vm887
    %v889 = vsel %vm888, %v881, %v885
    %v890 = vand.u32 2147483647, %v849
    %vm891 = vcmp.eq.f32.partialorder %v890, 8.507059e+37
    %v892 = vand.u32 %v849, 2147483648
    %v893 = vor.u32 1.1754944e-38, %v892
    %v894 = vsel %vm891, %v893, %v889
    %v895 = vrcp.pop %v852
    %v896 = vmul.f32 %v852, %v895
    %v897 = vsub.f32 1.0, %v896
    %v898 = vmul.f32 %v895, %v897
    %v899 = vadd.f32 %v895, %v898
    %vm900 = vweird.f32 %v852
    %vm901 = vweird.f32 %v895
    %vm902 = vmor %vm900, %vm901
    %v903 = vsel %vm902, %v895, %v899
    %v904 = vand.u32 2147483647, %v852
    %vm905 = vcmp.eq.f32.partialorder %v904, 8.507059e+37
    %v906 = vand.u32 %v852, 2147483648
    %v907 = vor.u32 1.1754944e-38, %v906
    %v908 = vsel %vm905, %v907, %v903
    %v909 = vmul.f32 %v834, %v866
    %v910 = vmul.f32 %v836, %v880
    %v911 = vmul.f32 %v838, %v894
    %v912 = vmul.f32 %v840, %v908
    %v914 = vsel %vm712, %v909, 0
    %916 = vmatpush.msra.mxu0 0.0
    %917 = vmatpush.msra.mxu0 0.0
    %918 = vmatpush.msra.mxu0 0.0
    %919 = vmatpush.msra.mxu0 0.0
    %920 = vmatpush.msra.mxu0 0.0
    %921 = vmatpush.msra.mxu0 0.0
    %922 = vmatpush.msra.mxu0 0.0
    %923 = vmatpush.msra.mxu0 0.0
    %924 = vmatpush.msra.mxu0 0.0
    %925 = vmatpush.msra.mxu0 0.0
    %926 = vmatpush.msra.mxu0 0.0
    %927 = vmatpush.msra.mxu0 0.0
    %928 = vmatpush.msra.mxu0 0.0
    %929 = vmatpush.msra.mxu0 0.0
    %930 = vmatpush.msra.mxu0 0.0
    %931 = vmatpush.msra.mxu0 %v650
    %932 = vmatmul.f32.gmra.mxu0 %v914
    %v933 = vpop.f32.mrf.mxu0
    %v934 = vadd.f32 0.0, %v933
    %935 = vdwg.mxu0
    %v937 = vsel %vm712, %v910, 0
    %939 = vmatpush.msra.mxu0 0.0
    %940 = vmatpush.msra.mxu0 0.0
    %941 = vmatpush.msra.mxu0 0.0
    %942 = vmatpush.msra.mxu0 0.0
    %943 = vmatpush.msra.mxu0 0.0
    %944 = vmatpush.msra.mxu0 0.0
    %945 = vmatpush.msra.mxu0 0.0
    %946 = vmatpush.msra.mxu0 0.0
    %947 = vmatpush.msra.mxu0 0.0
    %948 = vmatpush.msra.mxu0 0.0
    %949 = vmatpush.msra.mxu0 0.0
    %950 = vmatpush.msra.mxu0 0.0
    %951 = vmatpush.msra.mxu0 0.0
    %952 = vmatpush.msra.mxu0 0.0
    %953 = vmatpush.msra.mxu0 0.0
    %954 = vmatpush.msra.mxu0 %v670
    %955 = vmatmul.f32.gmra.mxu0 %v937
    %v956 = vpop.f32.mrf.mxu0
    %v957 = vadd.f32 0.0, %v956
    %958 = vdwg.mxu0
    %v960 = vsel %vm712, %v911, 0
    %962 = vmatpush.msra.mxu0 0.0
    %963 = vmatpush.msra.mxu0 0.0
    %964 = vmatpush.msra.mxu0 0.0
    %965 = vmatpush.msra.mxu0 0.0
    %966 = vmatpush.msra.mxu0 0.0
    %967 = vmatpush.msra.mxu0 0.0
    %968 = vmatpush.msra.mxu0 0.0
    %969 = vmatpush.msra.mxu0 0.0
    %970 = vmatpush.msra.mxu0 0.0
    %971 = vmatpush.msra.mxu0 0.0
    %972 = vmatpush.msra.mxu0 0.0
    %973 = vmatpush.msra.mxu0 0.0
    %974 = vmatpush.msra.mxu0 0.0
    %975 = vmatpush.msra.mxu0 0.0
    %976 = vmatpush.msra.mxu0 0.0
    %977 = vmatpush.msra.mxu0 %v690
    %978 = vmatmul.f32.gmra.mxu0 %v960
    %v979 = vpop.f32.mrf.mxu0
    %v980 = vadd.f32 0.0, %v979
    %981 = vdwg.mxu0
    %v983 = vsel %vm712, %v912, 0
    %985 = vmatpush.msra.mxu0 0.0
    %986 = vmatpush.msra.mxu0 0.0
    %987 = vmatpush.msra.mxu0 0.0
    %988 = vmatpush.msra.mxu0 0.0
    %989 = vmatpush.msra.mxu0 0.0
    %990 = vmatpush.msra.mxu0 0.0
    %991 = vmatpush.msra.mxu0 0.0
    %992 = vmatpush.msra.mxu0 0.0
    %993 = vmatpush.msra.mxu0 0.0
    %994 = vmatpush.msra.mxu0 0.0
    %995 = vmatpush.msra.mxu0 0.0
    %996 = vmatpush.msra.mxu0 0.0
    %997 = vmatpush.msra.mxu0 0.0
    %998 = vmatpush.msra.mxu0 0.0
    %999 = vmatpush.msra.mxu0 0.0
    %1000 = vmatpush.msra.mxu0 %v710
    %1001 = vmatmul.f32.gmra.mxu0 %v983
    %v1002 = vpop.f32.mrf.mxu0
    %v1003 = vadd.f32 0.0, %v1002
    %1004 = vdwg.mxu0
    %1006 = vrot.lane.b32.xlu0 %v957, 8
    %v1007 = vpop.permute.xlu0 %1006
    %1010 = vrot.lane.b32.xlu0 %v980, 16
    %v1011 = vpop.permute.xlu0 %1010
    %1014 = vrot.lane.b32.xlu0 %v1003, 24
    %v1015 = vpop.permute.xlu0 %1014
    %v1017 = vsel %vm712, %v934, %v1007
    %vm1018 = vcmask 130048
    %v1019 = vsel %vm1018, %v1017, %v1011
    %vm1020 = vcmask 195584
    %v1021 = vsel %vm1020, %v1019, %v1015
    %v1023 = vperm.slane %v299, 0
    %v1026 = vsel %vm397, %v1021, 0
    %1028 = vmatpush.msra.mxu0 0.0
    %1029 = vmatpush.msra.mxu0 0.0
    %1030 = vmatpush.msra.mxu0 0.0
    %1031 = vmatpush.msra.mxu0 0.0
    %1032 = vmatpush.msra.mxu0 0.0
    %1033 = vmatpush.msra.mxu0 0.0
    %1034 = vmatpush.msra.mxu0 0.0
    %1035 = vmatpush.msra.mxu0 0.0
    %1036 = vmatpush.msra.mxu0 0.0
    %1037 = vmatpush.msra.mxu0 0.0
    %1038 = vmatpush.msra.mxu0 0.0
    %1039 = vmatpush.msra.mxu0 0.0
    %1040 = vmatpush.msra.mxu0 %v298
    %1041 = vmatpush.msra.mxu0 %v297
    %1042 = vmatpush.msra.mxu0 %v296
    %1043 = vmatpush.msra.mxu0 %v295
    %1044 = vmatmul.f32.gmra.mxu0 %v1026
    %v1045 = vpop.f32.mrf.mxu0
    %v1046 = vadd.f32 %v1023, %v1045
    %1047 = vdwg.mxu0
    %v1048 = vld [vmem:[#allocation8] sm:$0x1]
    %v1049 = vld [vmem:[#allocation8 + $0x2] sm:$0x1]
    %v1050 = vld [vmem:[#allocation8 + $0x4] sm:$0x1]
    %v1051 = vld [vmem:[#allocation8 + $0x6] sm:$0x1]
    %v1052 = vld [vmem:[#allocation8 + $0x8] sm:$0x1]
    %v1053 = vld [vmem:[#allocation8 + $0xa] sm:$0x1]
    %v1054 = vld [vmem:[#allocation8 + $0xc] sm:$0x1]
    %v1055 = vld [vmem:[#allocation8 + $0xe] sm:$0x1]
    %v1064 = vrot.slane %v1049, 7
    %v1065 = vsel %vm377, %v1064, %v1048
    %v1066 = vrot.slane %v1050, 6
    %v1067 = vsel %vm380, %v1066, %v1065
    %v1068 = vrot.slane %v1051, 5
    %v1069 = vsel %vm383, %v1068, %v1067
    %v1070 = vrot.slane %v1052, 4
    %v1071 = vsel %vm386, %v1070, %v1069
    %v1072 = vrot.slane %v1053, 3
    %v1073 = vsel %vm389, %v1072, %v1071
    %v1074 = vrot.slane %v1054, 2
    %v1075 = vsel %vm392, %v1074, %v1073
    %v1076 = vrot.slane %v1055, 1
    %v1077 = vsel %vm395, %v1076, %v1075
    %v1079 = vadd.f32 %v1046, %v1077
    %v1081 = vrot.slane %v1079, 1
    %v1082 = vrot.slane %v1079, 2
    %v1083 = vrot.slane %v1079, 3
    %v1084 = vrot.slane %v1079, 4
    %v1085 = vrot.slane %v1079, 5
    %v1086 = vrot.slane %v1079, 6
    %v1087 = vrot.slane %v1079, 7
    %vm1095 = vcmask 253952
    %1096 = vst.msk [vmem:[#allocation22] sm:$0x1] %vm1095, %v1079
    %1097 = vst.msk [vmem:[#allocation22 + $0x2] sm:$0x1] %vm1095, %v1081
    %1098 = vst.msk [vmem:[#allocation22 + $0x4] sm:$0x1] %vm1095, %v1082
    %1099 = vst.msk [vmem:[#allocation22 + $0x6] sm:$0x1] %vm1095, %v1083
    %1100 = vst.msk [vmem:[#allocation22 + $0x8] sm:$0x1] %vm1095, %v1084
    %1101 = vst.msk [vmem:[#allocation22 + $0xa] sm:$0x1] %vm1095, %v1085
    %1102 = vst.msk [vmem:[#allocation22 + $0xc] sm:$0x1] %vm1095, %v1086
    %1103 = vst.msk [vmem:[#allocation22 + $0xe] sm:$0x1] %vm1095, %v1087
    %v1104 = vld [vmem:[#allocation2 + $0x1] sm:$0x1]
    %v1105 = vld [vmem:[#allocation2 + $0x3] sm:$0x1]
    %v1106 = vld [vmem:[#allocation2 + $0x5] sm:$0x1]
    %v1107 = vld [vmem:[#allocation2 + $0x7] sm:$0x1]
    %v1108 = vld [vmem:[#allocation2 + $0x9] sm:$0x1]
    %v1109 = vld [vmem:[#allocation2 + $0xb] sm:$0x1]
    %v1110 = vld [vmem:[#allocation2 + $0xd] sm:$0x1]
    %v1111 = vld [vmem:[#allocation2 + $0xf] sm:$0x1]
    %v1112 = vld [vmem:[#allocation5 + $0x1] sm:$0x1]
    %v1113 = vld [vmem:[#allocation5 + $0x3] sm:$0x1]
    %v1114 = vld [vmem:[#allocation5 + $0x5] sm:$0x1]
    %v1115 = vld [vmem:[#allocation5 + $0x7] sm:$0x1]
    %v1116 = vld [vmem:[#allocation5 + $0x9] sm:$0x1]
    %v1117 = vld [vmem:[#allocation5 + $0xb] sm:$0x1]
    %v1118 = vld [vmem:[#allocation5 + $0xd] sm:$0x1]
    %v1119 = vld [vmem:[#allocation5 + $0xf] sm:$0x1]
    %v1120 = vld [vmem:[#allocation7 + $0x1] sm:$0x1]
    %v1121 = vld [vmem:[#allocation7 + $0x3] sm:$0x1]
    %v1122 = vld [vmem:[#allocation7 + $0x5] sm:$0x1]
    %v1123 = vld [vmem:[#allocation7 + $0x7] sm:$0x1]
    %v1124 = vld [vmem:[#allocation7 + $0x9] sm:$0x1]
    %v1125 = vld [vmem:[#allocation7 + $0xb] sm:$0x1]
    %v1126 = vld [vmem:[#allocation7 + $0xd] sm:$0x1]
    %v1127 = vld [vmem:[#allocation7 + $0xf] sm:$0x1]
    %v1128 = vld [vmem:[#allocation10 + $0x1] sm:$0x1]
    %v1129 = vld [vmem:[#allocation10 + $0x3] sm:$0x1]
    %v1130 = vld [vmem:[#allocation10 + $0x5] sm:$0x1]
    %v1131 = vld [vmem:[#allocation10 + $0x7] sm:$0x1]
    %v1132 = vld [vmem:[#allocation10 + $0x9] sm:$0x1]
    %v1133 = vld [vmem:[#allocation10 + $0xb] sm:$0x1]
    %v1134 = vld [vmem:[#allocation10 + $0xd] sm:$0x1]
    %v1135 = vld [vmem:[#allocation10 + $0xf] sm:$0x1]
    %v1136 = vadd.f32 %v1104, %v1128
    %v1137 = vadd.f32 %v1105, %v1129
    %v1138 = vadd.f32 %v1106, %v1130
    %v1139 = vadd.f32 %v1107, %v1131
    %v1140 = vadd.f32 %v1108, %v1132
    %v1141 = vadd.f32 %v1109, %v1133
    %v1142 = vadd.f32 %v1110, %v1134
    %v1143 = vadd.f32 %v1111, %v1135
    %v1144 = vld [vmem:[#allocation11 + $0x1] sm:$0x1]
    %v1145 = vld [vmem:[#allocation11 + $0x3] sm:$0x1]
    %v1146 = vld [vmem:[#allocation11 + $0x5] sm:$0x1]
    %v1147 = vld [vmem:[#allocation11 + $0x7] sm:$0x1]
    %v1148 = vld [vmem:[#allocation11 + $0x9] sm:$0x1]
    %v1149 = vld [vmem:[#allocation11 + $0xb] sm:$0x1]
    %v1150 = vld [vmem:[#allocation11 + $0xd] sm:$0x1]
    %v1151 = vld [vmem:[#allocation11 + $0xf] sm:$0x1]
    %v1152 = vadd.f32 %v1112, %v1144
    %v1153 = vadd.f32 %v1113, %v1145
    %v1154 = vadd.f32 %v1114, %v1146
    %v1155 = vadd.f32 %v1115, %v1147
    %v1156 = vadd.f32 %v1116, %v1148
    %v1157 = vadd.f32 %v1117, %v1149
    %v1158 = vadd.f32 %v1118, %v1150
    %v1159 = vadd.f32 %v1119, %v1151
    %v1168 = vrot.slane %v1137, 7
    %v1169 = vsel %vm377, %v1168, %v1136
    %v1170 = vrot.slane %v1138, 6
    %v1171 = vsel %vm380, %v1170, %v1169
    %v1172 = vrot.slane %v1139, 5
    %v1173 = vsel %vm383, %v1172, %v1171
    %v1174 = vrot.slane %v1140, 4
    %v1175 = vsel %vm386, %v1174, %v1173
    %v1176 = vrot.slane %v1141, 3
    %v1177 = vsel %vm389, %v1176, %v1175
    %v1178 = vrot.slane %v1142, 2
    %v1179 = vsel %vm392, %v1178, %v1177
    %v1180 = vrot.slane %v1143, 1
    %v1181 = vsel %vm395, %v1180, %v1179
    %v1182 = vsel %vm397, %v1181, 0
    %1184 = vmatpush.msra.mxu0 0.0
    %1185 = vmatpush.msra.mxu0 0.0
    %1186 = vmatpush.msra.mxu0 0.0
    %1187 = vmatpush.msra.mxu0 0.0
    %1188 = vmatpush.msra.mxu0 0.0
    %1189 = vmatpush.msra.mxu0 0.0
    %1190 = vmatpush.msra.mxu0 0.0
    %1191 = vmatpush.msra.mxu0 0.0
    %1192 = vmatpush.msra.mxu0 0.0
    %1193 = vmatpush.msra.mxu0 0.0
    %1194 = vmatpush.msra.mxu0 0.0
    %1195 = vmatpush.msra.mxu0 0.0
    %1196 = vmatpush.msra.mxu0 %v238
    %1197 = vmatpush.msra.mxu0 %v237
    %1198 = vmatpush.msra.mxu0 %v236
    %1199 = vmatpush.msra.mxu0 %v235
    %1200 = vmatmul.f32.gmra.mxu0 %v1182
    %v1201 = vpop.f32.mrf.mxu0
    %v1202 = vadd.f32 %v360, %v1201
    %1203 = vdwg.mxu0
    %1204 = vmatpush.msra.mxu0 0.0
    %1205 = vmatpush.msra.mxu0 0.0
    %1206 = vmatpush.msra.mxu0 0.0
    %1207 = vmatpush.msra.mxu0 0.0
    %1208 = vmatpush.msra.mxu0 0.0
    %1209 = vmatpush.msra.mxu0 0.0
    %1210 = vmatpush.msra.mxu0 0.0
    %1211 = vmatpush.msra.mxu0 0.0
    %1212 = vmatpush.msra.mxu0 0.0
    %1213 = vmatpush.msra.mxu0 0.0
    %1214 = vmatpush.msra.mxu0 0.0
    %1215 = vmatpush.msra.mxu0 0.0
    %1216 = vmatpush.msra.mxu0 %v242
    %1217 = vmatpush.msra.mxu0 %v241
    %1218 = vmatpush.msra.mxu0 %v240
    %1219 = vmatpush.msra.mxu0 %v239
    %1220 = vmatmul.f32.gmra.mxu0 %v1182
    %v1221 = vpop.f32.mrf.mxu0
    %v1222 = vadd.f32 %v361, %v1221
    %1223 = vdwg.mxu0
    %1224 = vmatpush.msra.mxu0 0.0
    %1225 = vmatpush.msra.mxu0 0.0
    %1226 = vmatpush.msra.mxu0 0.0
    %1227 = vmatpush.msra.mxu0 0.0
    %1228 = vmatpush.msra.mxu0 0.0
    %1229 = vmatpush.msra.mxu0 0.0
    %1230 = vmatpush.msra.mxu0 0.0
    %1231 = vmatpush.msra.mxu0 0.0
    %1232 = vmatpush.msra.mxu0 0.0
    %1233 = vmatpush.msra.mxu0 0.0
    %1234 = vmatpush.msra.mxu0 0.0
    %1235 = vmatpush.msra.mxu0 0.0
    %1236 = vmatpush.msra.mxu0 %v246
    %1237 = vmatpush.msra.mxu0 %v245
    %1238 = vmatpush.msra.mxu0 %v244
    %1239 = vmatpush.msra.mxu0 %v243
    %1240 = vmatmul.f32.gmra.mxu0 %v1182
    %v1241 = vpop.f32.mrf.mxu0
    %v1242 = vadd.f32 %v362, %v1241
    %1243 = vdwg.mxu0
    %1244 = vmatpush.msra.mxu0 0.0
    %1245 = vmatpush.msra.mxu0 0.0
    %1246 = vmatpush.msra.mxu0 0.0
    %1247 = vmatpush.msra.mxu0 0.0
    %1248 = vmatpush.msra.mxu0 0.0
    %1249 = vmatpush.msra.mxu0 0.0
    %1250 = vmatpush.msra.mxu0 0.0
    %1251 = vmatpush.msra.mxu0 0.0
    %1252 = vmatpush.msra.mxu0 0.0
    %1253 = vmatpush.msra.mxu0 0.0
    %1254 = vmatpush.msra.mxu0 0.0
    %1255 = vmatpush.msra.mxu0 0.0
    %1256 = vmatpush.msra.mxu0 %v250
    %1257 = vmatpush.msra.mxu0 %v249
    %1258 = vmatpush.msra.mxu0 %v248
    %1259 = vmatpush.msra.mxu0 %v247
    %1260 = vmatmul.f32.gmra.mxu0 %v1182
    %v1261 = vpop.f32.mrf.mxu0
    %v1262 = vadd.f32 %v363, %v1261
    %1263 = vdwg.mxu0
    %v1272 = vrot.slane %v1153, 7
    %v1273 = vsel %vm377, %v1272, %v1152
    %v1274 = vrot.slane %v1154, 6
    %v1275 = vsel %vm380, %v1274, %v1273
    %v1276 = vrot.slane %v1155, 5
    %v1277 = vsel %vm383, %v1276, %v1275
    %v1278 = vrot.slane %v1156, 4
    %v1279 = vsel %vm386, %v1278, %v1277
    %v1280 = vrot.slane %v1157, 3
    %v1281 = vsel %vm389, %v1280, %v1279
    %v1282 = vrot.slane %v1158, 2
    %v1283 = vsel %vm392, %v1282, %v1281
    %v1284 = vrot.slane %v1159, 1
    %v1285 = vsel %vm395, %v1284, %v1283
    %v1286 = vsel %vm397, %v1285, 0
    %1288 = vmatpush.msra.mxu0 0.0
    %1289 = vmatpush.msra.mxu0 0.0
    %1290 = vmatpush.msra.mxu0 0.0
    %1291 = vmatpush.msra.mxu0 0.0
    %1292 = vmatpush.msra.mxu0 0.0
    %1293 = vmatpush.msra.mxu0 0.0
    %1294 = vmatpush.msra.mxu0 0.0
    %1295 = vmatpush.msra.mxu0 0.0
    %1296 = vmatpush.msra.mxu0 0.0
    %1297 = vmatpush.msra.mxu0 0.0
    %1298 = vmatpush.msra.mxu0 0.0
    %1299 = vmatpush.msra.mxu0 0.0
    %1300 = vmatpush.msra.mxu0 %v254
    %1301 = vmatpush.msra.mxu0 %v253
    %1302 = vmatpush.msra.mxu0 %v252
    %1303 = vmatpush.msra.mxu0 %v251
    %1304 = vmatmul.f32.gmra.mxu0 %v1286
    %v1305 = vpop.f32.mrf.mxu0
    %v1306 = vadd.f32 %v484, %v1305
    %1307 = vdwg.mxu0
    %1308 = vmatpush.msra.mxu0 0.0
    %1309 = vmatpush.msra.mxu0 0.0
    %1310 = vmatpush.msra.mxu0 0.0
    %1311 = vmatpush.msra.mxu0 0.0
    %1312 = vmatpush.msra.mxu0 0.0
    %1313 = vmatpush.msra.mxu0 0.0
    %1314 = vmatpush.msra.mxu0 0.0
    %1315 = vmatpush.msra.mxu0 0.0
    %1316 = vmatpush.msra.mxu0 0.0
    %1317 = vmatpush.msra.mxu0 0.0
    %1318 = vmatpush.msra.mxu0 0.0
    %1319 = vmatpush.msra.mxu0 0.0
    %1320 = vmatpush.msra.mxu0 %v258
    %1321 = vmatpush.msra.mxu0 %v257
    %1322 = vmatpush.msra.mxu0 %v256
    %1323 = vmatpush.msra.mxu0 %v255
    %1324 = vmatmul.f32.gmra.mxu0 %v1286
    %v1325 = vpop.f32.mrf.mxu0
    %v1326 = vadd.f32 %v485, %v1325
    %1327 = vdwg.mxu0
    %1328 = vmatpush.msra.mxu0 0.0
    %1329 = vmatpush.msra.mxu0 0.0
    %1330 = vmatpush.msra.mxu0 0.0
    %1331 = vmatpush.msra.mxu0 0.0
    %1332 = vmatpush.msra.mxu0 0.0
    %1333 = vmatpush.msra.mxu0 0.0
    %1334 = vmatpush.msra.mxu0 0.0
    %1335 = vmatpush.msra.mxu0 0.0
    %1336 = vmatpush.msra.mxu0 0.0
    %1337 = vmatpush.msra.mxu0 0.0
    %1338 = vmatpush.msra.mxu0 0.0
    %1339 = vmatpush.msra.mxu0 0.0
    %1340 = vmatpush.msra.mxu0 %v262
    %1341 = vmatpush.msra.mxu0 %v261
    %1342 = vmatpush.msra.mxu0 %v260
    %1343 = vmatpush.msra.mxu0 %v259
    %1344 = vmatmul.f32.gmra.mxu0 %v1286
    %v1345 = vpop.f32.mrf.mxu0
    %v1346 = vadd.f32 %v486, %v1345
    %1347 = vdwg.mxu0
    %1348 = vmatpush.msra.mxu0 0.0
    %1349 = vmatpush.msra.mxu0 0.0
    %1350 = vmatpush.msra.mxu0 0.0
    %1351 = vmatpush.msra.mxu0 0.0
    %1352 = vmatpush.msra.mxu0 0.0
    %1353 = vmatpush.msra.mxu0 0.0
    %1354 = vmatpush.msra.mxu0 0.0
    %1355 = vmatpush.msra.mxu0 0.0
    %1356 = vmatpush.msra.mxu0 0.0
    %1357 = vmatpush.msra.mxu0 0.0
    %1358 = vmatpush.msra.mxu0 0.0
    %1359 = vmatpush.msra.mxu0 0.0
    %1360 = vmatpush.msra.mxu0 %v266
    %1361 = vmatpush.msra.mxu0 %v265
    %1362 = vmatpush.msra.mxu0 %v264
    %1363 = vmatpush.msra.mxu0 %v263
    %1364 = vmatmul.f32.gmra.mxu0 %v1286
    %v1365 = vpop.f32.mrf.mxu0
    %v1366 = vadd.f32 %v487, %v1365
    %1367 = vdwg.mxu0
    %v1376 = vrot.slane %v1121, 7
    %v1377 = vsel %vm377, %v1376, %v1120
    %v1378 = vrot.slane %v1122, 6
    %v1379 = vsel %vm380, %v1378, %v1377
    %v1380 = vrot.slane %v1123, 5
    %v1381 = vsel %vm383, %v1380, %v1379
    %v1382 = vrot.slane %v1124, 4
    %v1383 = vsel %vm386, %v1382, %v1381
    %v1384 = vrot.slane %v1125, 3
    %v1385 = vsel %vm389, %v1384, %v1383
    %v1386 = vrot.slane %v1126, 2
    %v1387 = vsel %vm392, %v1386, %v1385
    %v1388 = vrot.slane %v1127, 1
    %v1389 = vsel %vm395, %v1388, %v1387
    %v1390 = vsel %vm397, %v1389, 0
    %1392 = vmatpush.msra.mxu0 0.0
    %1393 = vmatpush.msra.mxu0 0.0
    %1394 = vmatpush.msra.mxu0 0.0
    %1395 = vmatpush.msra.mxu0 0.0
    %1396 = vmatpush.msra.mxu0 0.0
    %1397 = vmatpush.msra.mxu0 0.0
    %1398 = vmatpush.msra.mxu0 0.0
    %1399 = vmatpush.msra.mxu0 0.0
    %1400 = vmatpush.msra.mxu0 0.0
    %1401 = vmatpush.msra.mxu0 0.0
    %1402 = vmatpush.msra.mxu0 0.0
    %1403 = vmatpush.msra.mxu0 0.0
    %1404 = vmatpush.msra.mxu0 %v270
    %1405 = vmatpush.msra.mxu0 %v269
    %1406 = vmatpush.msra.mxu0 %v268
    %1407 = vmatpush.msra.mxu0 %v267
    %1408 = vmatmul.f32.gmra.mxu0 %v1390
    %v1409 = vpop.f32.mrf.mxu0
    %v1410 = vadd.f32 %v600, %v1409
    %1411 = vdwg.mxu0
    %1412 = vmatpush.msra.mxu0 0.0
    %1413 = vmatpush.msra.mxu0 0.0
    %1414 = vmatpush.msra.mxu0 0.0
    %1415 = vmatpush.msra.mxu0 0.0
    %1416 = vmatpush.msra.mxu0 0.0
    %1417 = vmatpush.msra.mxu0 0.0
    %1418 = vmatpush.msra.mxu0 0.0
    %1419 = vmatpush.msra.mxu0 0.0
    %1420 = vmatpush.msra.mxu0 0.0
    %1421 = vmatpush.msra.mxu0 0.0
    %1422 = vmatpush.msra.mxu0 0.0
    %1423 = vmatpush.msra.mxu0 0.0
    %1424 = vmatpush.msra.mxu0 %v274
    %1425 = vmatpush.msra.mxu0 %v273
    %1426 = vmatpush.msra.mxu0 %v272
    %1427 = vmatpush.msra.mxu0 %v271
    %1428 = vmatmul.f32.gmra.mxu0 %v1390
    %v1429 = vpop.f32.mrf.mxu0
    %v1430 = vadd.f32 %v601, %v1429
    %1431 = vdwg.mxu0
    %1432 = vmatpush.msra.mxu0 0.0
    %1433 = vmatpush.msra.mxu0 0.0
    %1434 = vmatpush.msra.mxu0 0.0
    %1435 = vmatpush.msra.mxu0 0.0
    %1436 = vmatpush.msra.mxu0 0.0
    %1437 = vmatpush.msra.mxu0 0.0
    %1438 = vmatpush.msra.mxu0 0.0
    %1439 = vmatpush.msra.mxu0 0.0
    %1440 = vmatpush.msra.mxu0 0.0
    %1441 = vmatpush.msra.mxu0 0.0
    %1442 = vmatpush.msra.mxu0 0.0
    %1443 = vmatpush.msra.mxu0 0.0
    %1444 = vmatpush.msra.mxu0 %v278
    %1445 = vmatpush.msra.mxu0 %v277
    %1446 = vmatpush.msra.mxu0 %v276
    %1447 = vmatpush.msra.mxu0 %v275
    %1448 = vmatmul.f32.gmra.mxu0 %v1390
    %v1449 = vpop.f32.mrf.mxu0
    %v1450 = vadd.f32 %v602, %v1449
    %1451 = vdwg.mxu0
    %1452 = vmatpush.msra.mxu0 0.0
    %1453 = vmatpush.msra.mxu0 0.0
    %1454 = vmatpush.msra.mxu0 0.0
    %1455 = vmatpush.msra.mxu0 0.0
    %1456 = vmatpush.msra.mxu0 0.0
    %1457 = vmatpush.msra.mxu0 0.0
    %1458 = vmatpush.msra.mxu0 0.0
    %1459 = vmatpush.msra.mxu0 0.0
    %1460 = vmatpush.msra.mxu0 0.0
    %1461 = vmatpush.msra.mxu0 0.0
    %1462 = vmatpush.msra.mxu0 0.0
    %1463 = vmatpush.msra.mxu0 0.0
    %1464 = vmatpush.msra.mxu0 %v282
    %1465 = vmatpush.msra.mxu0 %v281
    %1466 = vmatpush.msra.mxu0 %v280
    %1467 = vmatpush.msra.mxu0 %v279
    %1468 = vmatmul.f32.gmra.mxu0 %v1390
    %v1469 = vpop.f32.mrf.mxu0
    %v1470 = vadd.f32 %v603, %v1469
    %1471 = vdwg.mxu0
    %v1473 = vsel %vm712, %v1202, 0
    %v1476 = vsel %vm712, %v1306, 0
    %1478 = vmatpush.xpose.msra.mxu0 0.0
    %1479 = vmatpush.xpose.msra.mxu0 0.0
    %1480 = vmatpush.xpose.msra.mxu0 0.0
    %1481 = vmatpush.xpose.msra.mxu0 0.0
    %1482 = vmatpush.xpose.msra.mxu0 0.0
    %1483 = vmatpush.xpose.msra.mxu0 0.0
    %1484 = vmatpush.xpose.msra.mxu0 0.0
    %1485 = vmatpush.xpose.msra.mxu0 0.0
    %1486 = vmatpush.xpose.msra.mxu0 0.0
    %1487 = vmatpush.xpose.msra.mxu0 0.0
    %1488 = vmatpush.xpose.msra.mxu0 0.0
    %1489 = vmatpush.xpose.msra.mxu0 0.0
    %1490 = vmatpush.xpose.msra.mxu0 0.0
    %1491 = vmatpush.xpose.msra.mxu0 0.0
    %1492 = vmatpush.xpose.msra.mxu0 0.0
    %1493 = vmatpush.xpose.msra.mxu0 %v1476
    %1494 = vmatmul.f32.gmra.mxu0 %v1473
    %v1495 = vpop.f32.mrf.mxu0
    %v1496 = vadd.f32 0.0, %v1495
    %1497 = vdwg.mxu0
    %v1499 = vsel %vm712, %v1222, 0
    %v1502 = vsel %vm712, %v1326, 0
    %1504 = vmatpush.xpose.msra.mxu0 0.0
    %1505 = vmatpush.xpose.msra.mxu0 0.0
    %1506 = vmatpush.xpose.msra.mxu0 0.0
    %1507 = vmatpush.xpose.msra.mxu0 0.0
    %1508 = vmatpush.xpose.msra.mxu0 0.0
    %1509 = vmatpush.xpose.msra.mxu0 0.0
    %1510 = vmatpush.xpose.msra.mxu0 0.0
    %1511 = vmatpush.xpose.msra.mxu0 0.0
    %1512 = vmatpush.xpose.msra.mxu0 0.0
    %1513 = vmatpush.xpose.msra.mxu0 0.0
    %1514 = vmatpush.xpose.msra.mxu0 0.0
    %1515 = vmatpush.xpose.msra.mxu0 0.0
    %1516 = vmatpush.xpose.msra.mxu0 0.0
    %1517 = vmatpush.xpose.msra.mxu0 0.0
    %1518 = vmatpush.xpose.msra.mxu0 0.0
    %1519 = vmatpush.xpose.msra.mxu0 %v1502
    %1520 = vmatmul.f32.gmra.mxu0 %v1499
    %v1521 = vpop.f32.mrf.mxu0
    %v1522 = vadd.f32 0.0, %v1521
    %1523 = vdwg.mxu0
    %v1525 = vsel %vm712, %v1242, 0
    %v1528 = vsel %vm712, %v1346, 0
    %1530 = vmatpush.xpose.msra.mxu0 0.0
    %1531 = vmatpush.xpose.msra.mxu0 0.0
    %1532 = vmatpush.xpose.msra.mxu0 0.0
    %1533 = vmatpush.xpose.msra.mxu0 0.0
    %1534 = vmatpush.xpose.msra.mxu0 0.0
    %1535 = vmatpush.xpose.msra.mxu0 0.0
    %1536 = vmatpush.xpose.msra.mxu0 0.0
    %1537 = vmatpush.xpose.msra.mxu0 0.0
    %1538 = vmatpush.xpose.msra.mxu0 0.0
    %1539 = vmatpush.xpose.msra.mxu0 0.0
    %1540 = vmatpush.xpose.msra.mxu0 0.0
    %1541 = vmatpush.xpose.msra.mxu0 0.0
    %1542 = vmatpush.xpose.msra.mxu0 0.0
    %1543 = vmatpush.xpose.msra.mxu0 0.0
    %1544 = vmatpush.xpose.msra.mxu0 0.0
    %1545 = vmatpush.xpose.msra.mxu0 %v1528
    %1546 = vmatmul.f32.gmra.mxu0 %v1525
    %v1547 = vpop.f32.mrf.mxu0
    %v1548 = vadd.f32 0.0, %v1547
    %1549 = vdwg.mxu0
    %v1551 = vsel %vm712, %v1262, 0
    %v1554 = vsel %vm712, %v1366, 0
    %1556 = vmatpush.xpose.msra.mxu0 0.0
    %1557 = vmatpush.xpose.msra.mxu0 0.0
    %1558 = vmatpush.xpose.msra.mxu0 0.0
    %1559 = vmatpush.xpose.msra.mxu0 0.0
    %1560 = vmatpush.xpose.msra.mxu0 0.0
    %1561 = vmatpush.xpose.msra.mxu0 0.0
    %1562 = vmatpush.xpose.msra.mxu0 0.0
    %1563 = vmatpush.xpose.msra.mxu0 0.0
    %1564 = vmatpush.xpose.msra.mxu0 0.0
    %1565 = vmatpush.xpose.msra.mxu0 0.0
    %1566 = vmatpush.xpose.msra.mxu0 0.0
    %1567 = vmatpush.xpose.msra.mxu0 0.0
    %1568 = vmatpush.xpose.msra.mxu0 0.0
    %1569 = vmatpush.xpose.msra.mxu0 0.0
    %1570 = vmatpush.xpose.msra.mxu0 0.0
    %1571 = vmatpush.xpose.msra.mxu0 %v1554
    %1572 = vmatmul.f32.gmra.mxu0 %v1551
    %v1573 = vpop.f32.mrf.mxu0
    %v1574 = vadd.f32 0.0, %v1573
    %1575 = vdwg.mxu0
    %v1576 = vsel %vm712, %v1496, -inf
    %1577 = vmax.xlane.f32.xlu0 %v1576
    %v1578 = vpop.xlane.xlu0 %1577
    %v1579 = vsel %vm712, %v1522, -inf
    %1580 = vmax.xlane.f32.xlu0 %v1579
    %v1581 = vpop.xlane.xlu0 %1580
    %v1582 = vsel %vm712, %v1548, -inf
    %1583 = vmax.xlane.f32.xlu0 %v1582
    %v1584 = vpop.xlane.xlu0 %1583
    %v1585 = vsel %vm712, %v1574, -inf
    %1586 = vmax.xlane.f32.xlu0 %v1585
    %v1587 = vpop.xlane.xlu0 %1586
    %v1588 = vsub.f32 %v1496, %v1578
    %v1589 = vsub.f32 %v1522, %v1581
    %v1590 = vsub.f32 %v1548, %v1584
    %v1591 = vsub.f32 %v1574, %v1587
    %v1592 = vmul.f32 %v1588, 1.442695
    %v1593 = vpow.pop %v1592
    %v1594 = vmul.f32 %v1589, 1.442695
    %v1595 = vpow.pop %v1594
    %v1596 = vmul.f32 %v1590, 1.442695
    %v1597 = vpow.pop %v1596
    %v1598 = vmul.f32 %v1591, 1.442695
    %v1599 = vpow.pop %v1598
    %v1600 = vsel %vm712, %v1593, 0.0
    %1601 = vadd.xlane.f32.xlu0 %v1600
    %v1602 = vpop.xlane.xlu0 %1601
    %v1603 = vsel %vm712, %v1595, 0.0
    %1604 = vadd.xlane.f32.xlu0 %v1603
    %v1605 = vpop.xlane.xlu0 %1604
    %v1606 = vsel %vm712, %v1597, 0.0
    %1607 = vadd.xlane.f32.xlu0 %v1606
    %v1608 = vpop.xlane.xlu0 %1607
    %v1609 = vsel %vm712, %v1599, 0.0
    %1610 = vadd.xlane.f32.xlu0 %v1609
    %v1611 = vpop.xlane.xlu0 %1610
    %v1612 = vrcp.pop %v1602
    %v1613 = vmul.f32 %v1602, %v1612
    %v1614 = vsub.f32 1.0, %v1613
    %v1615 = vmul.f32 %v1612, %v1614
    %v1616 = vadd.f32 %v1612, %v1615
    %vm1617 = vweird.f32 %v1602
    %vm1618 = vweird.f32 %v1612
    %vm1619 = vmor %vm1617, %vm1618
    %v1620 = vsel %vm1619, %v1612, %v1616
    %v1621 = vand.u32 2147483647, %v1602
    %vm1622 = vcmp.eq.f32.partialorder %v1621, 8.507059e+37
    %v1623 = vand.u32 %v1602, 2147483648
    %v1624 = vor.u32 1.1754944e-38, %v1623
    %v1625 = vsel %vm1622, %v1624, %v1620
    %v1626 = vrcp.pop %v1605
    %v1627 = vmul.f32 %v1605, %v1626
    %v1628 = vsub.f32 1.0, %v1627
    %v1629 = vmul.f32 %v1626, %v1628
    %v1630 = vadd.f32 %v1626, %v1629
    %vm1631 = vweird.f32 %v1605
    %vm1632 = vweird.f32 %v1626
    %vm1633 = vmor %vm1631, %vm1632
    %v1634 = vsel %vm1633, %v1626, %v1630
    %v1635 = vand.u32 2147483647, %v1605
    %vm1636 = vcmp.eq.f32.partialorder %v1635, 8.507059e+37
    %v1637 = vand.u32 %v1605, 2147483648
    %v1638 = vor.u32 1.1754944e-38, %v1637
    %v1639 = vsel %vm1636, %v1638, %v1634
    %v1640 = vrcp.pop %v1608
    %v1641 = vmul.f32 %v1608, %v1640
    %v1642 = vsub.f32 1.0, %v1641
    %v1643 = vmul.f32 %v1640, %v1642
    %v1644 = vadd.f32 %v1640, %v1643
    %vm1645 = vweird.f32 %v1608
    %vm1646 = vweird.f32 %v1640
    %vm1647 = vmor %vm1645, %vm1646
    %v1648 = vsel %vm1647, %v1640, %v1644
    %v1649 = vand.u32 2147483647, %v1608
    %vm1650 = vcmp.eq.f32.partialorder %v1649, 8.507059e+37
    %v1651 = vand.u32 %v1608, 2147483648
    %v1652 = vor.u32 1.1754944e-38, %v1651
    %v1653 = vsel %vm1650, %v1652, %v1648
    %v1654 = vrcp.pop %v1611
    %v1655 = vmul.f32 %v1611, %v1654
    %v1656 = vsub.f32 1.0, %v1655
    %v1657 = vmul.f32 %v1654, %v1656
    %v1658 = vadd.f32 %v1654, %v1657
    %vm1659 = vweird.f32 %v1611
    %vm1660 = vweird.f32 %v1654
    %vm1661 = vmor %vm1659, %vm1660
    %v1662 = vsel %vm1661, %v1654, %v1658
    %v1663 = vand.u32 2147483647, %v1611
    %vm1664 = vcmp.eq.f32.partialorder %v1663, 8.507059e+37
    %v1665 = vand.u32 %v1611, 2147483648
    %v1666 = vor.u32 1.1754944e-38, %v1665
    %v1667 = vsel %vm1664, %v1666, %v1662
    %v1668 = vmul.f32 %v1593, %v1625
    %v1669 = vmul.f32 %v1595, %v1639
    %v1670 = vmul.f32 %v1597, %v1653
    %v1671 = vmul.f32 %v1599, %v1667
    %v1673 = vsel %vm712, %v1668, 0
    %1675 = vmatpush.msra.mxu0 0.0
    %1676 = vmatpush.msra.mxu0 0.0
    %1677 = vmatpush.msra.mxu0 0.0
    %1678 = vmatpush.msra.mxu0 0.0
    %1679 = vmatpush.msra.mxu0 0.0
    %1680 = vmatpush.msra.mxu0 0.0
    %1681 = vmatpush.msra.mxu0 0.0
    %1682 = vmatpush.msra.mxu0 0.0
    %1683 = vmatpush.msra.mxu0 0.0
    %1684 = vmatpush.msra.mxu0 0.0
    %1685 = vmatpush.msra.mxu0 0.0
    %1686 = vmatpush.msra.mxu0 0.0
    %1687 = vmatpush.msra.mxu0 0.0
    %1688 = vmatpush.msra.mxu0 0.0
    %1689 = vmatpush.msra.mxu0 0.0
    %1690 = vmatpush.msra.mxu0 %v1410
    %1691 = vmatmul.f32.gmra.mxu0 %v1673
    %v1692 = vpop.f32.mrf.mxu0
    %v1693 = vadd.f32 0.0, %v1692
    %1694 = vdwg.mxu0
    %v1696 = vsel %vm712, %v1669, 0
    %1698 = vmatpush.msra.mxu0 0.0
    %1699 = vmatpush.msra.mxu0 0.0
    %1700 = vmatpush.msra.mxu0 0.0
    %1701 = vmatpush.msra.mxu0 0.0
    %1702 = vmatpush.msra.mxu0 0.0
    %1703 = vmatpush.msra.mxu0 0.0
    %1704 = vmatpush.msra.mxu0 0.0
    %1705 = vmatpush.msra.mxu0 0.0
    %1706 = vmatpush.msra.mxu0 0.0
    %1707 = vmatpush.msra.mxu0 0.0
    %1708 = vmatpush.msra.mxu0 0.0
    %1709 = vmatpush.msra.mxu0 0.0
    %1710 = vmatpush.msra.mxu0 0.0
    %1711 = vmatpush.msra.mxu0 0.0
    %1712 = vmatpush.msra.mxu0 0.0
    %1713 = vmatpush.msra.mxu0 %v1430
    %1714 = vmatmul.f32.gmra.mxu0 %v1696
    %v1715 = vpop.f32.mrf.mxu0
    %v1716 = vadd.f32 0.0, %v1715
    %1717 = vdwg.mxu0
    %v1719 = vsel %vm712, %v1670, 0
    %1721 = vmatpush.msra.mxu0 0.0
    %1722 = vmatpush.msra.mxu0 0.0
    %1723 = vmatpush.msra.mxu0 0.0
    %1724 = vmatpush.msra.mxu0 0.0
    %1725 = vmatpush.msra.mxu0 0.0
    %1726 = vmatpush.msra.mxu0 0.0
    %1727 = vmatpush.msra.mxu0 0.0
    %1728 = vmatpush.msra.mxu0 0.0
    %1729 = vmatpush.msra.mxu0 0.0
    %1730 = vmatpush.msra.mxu0 0.0
    %1731 = vmatpush.msra.mxu0 0.0
    %1732 = vmatpush.msra.mxu0 0.0
    %1733 = vmatpush.msra.mxu0 0.0
    %1734 = vmatpush.msra.mxu0 0.0
    %1735 = vmatpush.msra.mxu0 0.0
    %1736 = vmatpush.msra.mxu0 %v1450
    %1737 = vmatmul.f32.gmra.mxu0 %v1719
    %v1738 = vpop.f32.mrf.mxu0
    %v1739 = vadd.f32 0.0, %v1738
    %1740 = vdwg.mxu0
    %v1742 = vsel %vm712, %v1671, 0
    %1744 = vmatpush.msra.mxu0 0.0
    %1745 = vmatpush.msra.mxu0 0.0
    %1746 = vmatpush.msra.mxu0 0.0
    %1747 = vmatpush.msra.mxu0 0.0
    %1748 = vmatpush.msra.mxu0 0.0
    %1749 = vmatpush.msra.mxu0 0.0
    %1750 = vmatpush.msra.mxu0 0.0
    %1751 = vmatpush.msra.mxu0 0.0
    %1752 = vmatpush.msra.mxu0 0.0
    %1753 = vmatpush.msra.mxu0 0.0
    %1754 = vmatpush.msra.mxu0 0.0
    %1755 = vmatpush.msra.mxu0 0.0
    %1756 = vmatpush.msra.mxu0 0.0
    %1757 = vmatpush.msra.mxu0 0.0
    %1758 = vmatpush.msra.mxu0 0.0
    %1759 = vmatpush.msra.mxu0 %v1470
    %1760 = vmatmul.f32.gmra.mxu0 %v1742
    %v1761 = vpop.f32.mrf.mxu0
    %v1762 = vadd.f32 0.0, %v1761
    %1763 = vdwg.mxu0
    %1765 = vrot.lane.b32.xlu0 %v1716, 8
    %v1766 = vpop.permute.xlu0 %1765
    %1769 = vrot.lane.b32.xlu0 %v1739, 16
    %v1770 = vpop.permute.xlu0 %1769
    %1773 = vrot.lane.b32.xlu0 %v1762, 24
    %v1774 = vpop.permute.xlu0 %1773
    %v1776 = vsel %vm712, %v1693, %v1766
    %v1777 = vsel %vm1018, %v1776, %v1770
    %v1778 = vsel %vm1020, %v1777, %v1774
    %v1780 = vsel %vm397, %v1778, 0
    %1782 = vmatpush.msra.mxu0 0.0
    %1783 = vmatpush.msra.mxu0 0.0
    %1784 = vmatpush.msra.mxu0 0.0
    %1785 = vmatpush.msra.mxu0 0.0
    %1786 = vmatpush.msra.mxu0 0.0
    %1787 = vmatpush.msra.mxu0 0.0
    %1788 = vmatpush.msra.mxu0 0.0
    %1789 = vmatpush.msra.mxu0 0.0
    %1790 = vmatpush.msra.mxu0 0.0
    %1791 = vmatpush.msra.mxu0 0.0
    %1792 = vmatpush.msra.mxu0 0.0
    %1793 = vmatpush.msra.mxu0 0.0
    %1794 = vmatpush.msra.mxu0 %v298
    %1795 = vmatpush.msra.mxu0 %v297
    %1796 = vmatpush.msra.mxu0 %v296
    %1797 = vmatpush.msra.mxu0 %v295
    %1798 = vmatmul.f32.gmra.mxu0 %v1780
    %v1799 = vpop.f32.mrf.mxu0
    %v1800 = vadd.f32 %v1023, %v1799
    %1801 = vdwg.mxu0
    %v1802 = vld [vmem:[#allocation8 + $0x1] sm:$0x1]
    %v1803 = vld [vmem:[#allocation8 + $0x3] sm:$0x1]
    %v1804 = vld [vmem:[#allocation8 + $0x5] sm:$0x1]
    %v1805 = vld [vmem:[#allocation8 + $0x7] sm:$0x1]
    %v1806 = vld [vmem:[#allocation8 + $0x9] sm:$0x1]
    %v1807 = vld [vmem:[#allocation8 + $0xb] sm:$0x1]
    %v1808 = vld [vmem:[#allocation8 + $0xd] sm:$0x1]
    %v1809 = vld [vmem:[#allocation8 + $0xf] sm:$0x1]
    %v1818 = vrot.slane %v1803, 7
    %v1819 = vsel %vm377, %v1818, %v1802
    %v1820 = vrot.slane %v1804, 6
    %v1821 = vsel %vm380, %v1820, %v1819
    %v1822 = vrot.slane %v1805, 5
    %v1823 = vsel %vm383, %v1822, %v1821
    %v1824 = vrot.slane %v1806, 4
    %v1825 = vsel %vm386, %v1824, %v1823
    %v1826 = vrot.slane %v1807, 3
    %v1827 = vsel %vm389, %v1826, %v1825
    %v1828 = vrot.slane %v1808, 2
    %v1829 = vsel %vm392, %v1828, %v1827
    %v1830 = vrot.slane %v1809, 1
    %v1831 = vsel %vm395, %v1830, %v1829
    %v1833 = vadd.f32 %v1800, %v1831
    %v1835 = vrot.slane %v1833, 1
    %v1836 = vrot.slane %v1833, 2
    %v1837 = vrot.slane %v1833, 3
    %v1838 = vrot.slane %v1833, 4
    %v1839 = vrot.slane %v1833, 5
    %v1840 = vrot.slane %v1833, 6
    %v1841 = vrot.slane %v1833, 7
    %1849 = vst.msk [vmem:[#allocation22 + $0x1] sm:$0x1] %vm1095, %v1833
    %1850 = vst.msk [vmem:[#allocation22 + $0x3] sm:$0x1] %vm1095, %v1835
    %1851 = vst.msk [vmem:[#allocation22 + $0x5] sm:$0x1] %vm1095, %v1836
    %1852 = vst.msk [vmem:[#allocation22 + $0x7] sm:$0x1] %vm1095, %v1837
    %1853 = vst.msk [vmem:[#allocation22 + $0x9] sm:$0x1] %vm1095, %v1838
    %1854 = vst.msk [vmem:[#allocation22 + $0xb] sm:$0x1] %vm1095, %v1839
    %1855 = vst.msk [vmem:[#allocation22 + $0xd] sm:$0x1] %vm1095, %v1840
    %1856 = vst.msk [vmem:[#allocation22 + $0xf] sm:$0x1] %vm1095, %v1841
    // Predicated region
    $region106: #{multihead_attention_pallas.1} parent=1 // pred_check
      _
    $region107: #{multihead_attention_pallas.1} parent=1 // pred_check_branch
      %1858 = sbr.rel (0) target = $region109
    $region108: #{multihead_attention_pallas.1} parent=1 // pred_region
      %1860 = vsyncadd [#allocation4], 0
      %s1861 = sshll.u32 [#allocation22], 4
      %s1862 = int_to_ptr.vmem [resolvable:$true] %s1861
      %s1863 = sshll.u32 %s14, 4
      %s1864 = int_to_ptr.hbm [resolvable:$true] %s1863
      %1869 = dma.vmem_to_hbm [thread:$0]  %s1862, 256, %s1864, [#allocation4], 32, 32, 2
    $region109: #{multihead_attention_pallas.1} parent=1 // pred_fallthru
      _
    // Predicated region
    $region110: #{multihead_attention_pallas.1} parent=1 // pred_check
      _
    $region111: #{multihead_attention_pallas.1} parent=1 // pred_check_branch
      %1871 = sbr.rel (0) target = $region113
    $region112: #{multihead_attention_pallas.1} parent=1 // pred_region
      %1873 = dma.done [#allocation4], 256
    $region113: #{multihead_attention_pallas.1} parent=1 // pred_fallthru
      _
    %1874 = vsyncpa [#allocation3], 1
    %1875 = vsyncpa [#allocation6], 1
    %1876 = vsyncpa [#allocation9], 1
    %1877 = vsyncpa [#allocation12], 1
    %1878 = vsyncpa [#allocation15], 1
    %1879 = vsyncpa [#allocation18], 1
    %1880 = vsyncpa [#allocation21], 1
    %1881 = vsyncpa [#allocation4], 1

</llo_original>
